<compile_context>
chip_gen: v6e
topology: v6e:2x2x1
jax: 0.10.0
libtpu: 0.0.40
codegen_flags: <defaults>
</compile_context>

<pallas_src>
import functools

import jax
import jax.numpy as jnp
from jax.experimental import pallas as pl
from jax.experimental.pallas import tpu as pltpu

# ---- module hyper-parameters --------------------------------------------
INPUT_DIM = 32        # emb
ATTN_DIM = 32         # attention_dim
NUM_HEADS = 2
HEAD_DIM = ATTN_DIM // NUM_HEADS
SCALE = float(HEAD_DIM) ** 0.5
BATCH = 2
SEQ_LEN = 8
MASK_FILL = -1.0e9    # fuxictr ScaledDotProductAttention masked_fill value

assert ATTN_DIM % NUM_HEADS == 0
assert 128 % INPUT_DIM == 0

_TB_CAP = 512                      # review item 1: amortize ~0.35us/step
PACK = 128 // INPUT_DIM            # batch rows packed per 128-lane output row
_ROUND = max(16, 8 * PACK)         # TB granularity: bf16 sublanes & out packing


def _mhta_kernel(tgt_ref, hist_ref, bias_ref, wq_ref, wkv_ref, s_ref,
                 sumh_ref, e_ref, wo_ref, out_ref):
  """One grid step == TB batch rows.

  tgt_ref : (TB, D)            bf16/f32  target items
  hist_ref: (TB, L*D)          bf16/f32  history, lane = l*D + d
  bias_ref: (TB, H*L)          bf16/f32  additive mask bias (0 / -1e9), lane = h*L + l
  wq_ref  : (D, L*A)           f32       W_q tiled over L (q pre-broadcast over l)
  wkv_ref : (L*D, 2*L*A)       f32       [block_diag(W_k) | block_diag(W_v)]
  s_ref   : (L*A, H*L)         f32       per-head score sum, 1/sqrt(head_dim) folded in
  sumh_ref: (H*L, H*L)         f32       per-head denominator sum + broadcast
  e_ref   : (H*L, L*A)         f32       per-head prob broadcast over head lanes
  wo_ref  : (PACK*L*A, PACK*D) f32       fused [sum over L] + W_o + lane packing
  out_ref : (TB//PACK, PACK*D) f32       lane-dense packed output
  """
  f32 = jnp.float32
  tb = tgt_ref.shape[0]
  la = hist_ref.shape[1]               # L * A
  lh = bias_ref.shape[1]               # H * L
  seq = lh // NUM_HEADS                # L
  tbp = tb // PACK

  # --- projections (MXU, f32 accumulation). q is emitted already tiled over
  #     L so no lane broadcast is needed; K & V come from one fused K=256 dot.
  q = jnp.dot(tgt_ref[...], wq_ref[...], preferred_element_type=f32)    # (TB, L*A)
  kv = jnp.dot(hist_ref[...], wkv_ref[...], preferred_element_type=f32)  # (TB, 2*L*A)
  k = kv[:, :la]                                                        # vreg-aligned
  v = kv[:, la:]

  # --- scores in the (TB, H*L) lane layout; mask as an additive bias -------
  scores = jnp.dot(k * q, s_ref[...], preferred_element_type=f32)       # (TB, H*L)
  scores = scores + bias_ref[...].astype(f32)

  # --- numerically stable softmax over L, per head (lane-masked maxima) ----
  lane = jax.lax.broadcasted_iota(jnp.int32, (1, lh), 1)
  neg = f32(-1e30)
  m = None
  for hh in range(NUM_HEADS):
    in_head = (lane >= hh * seq) & (lane < (hh + 1) * seq)
    mh = jnp.max(jnp.where(in_head, scores, neg), axis=-1, keepdims=True)
    m = mh if m is None else jnp.where(in_head, mh, m)
  p = jnp.exp(scores - m)                                               # (TB, H*L)
  denom = jnp.dot(p, sumh_ref[...], preferred_element_type=f32)         # per-head sum
  p = p * pl.reciprocal(denom, approx=False)

  # --- context: broadcast probs over each head's lanes (MXU), weight V -----
  p_la = jnp.dot(p, e_ref[...], preferred_element_type=f32)             # (TB, L*A)
  weighted = p_la * v                                                   # (TB, L*A)

  # --- fused [sum over L] + W_o + PACK-way batch-chunk lane packing --------
  # Lane-concat of PACK sublane chunks is vreg-aligned (256-lane pieces); the
  # block-diagonal wo_ref places each chunk's D output columns at its own
  # 32-lane offset, so the store below is a single full-width unmasked write.
  w_cat = jnp.concatenate(
      [weighted[j * tbp:(j + 1) * tbp, :] for j in range(PACK)], axis=1)
  out = jnp.dot(w_cat, wo_ref[...], preferred_element_type=f32)         # (TB/PACK, PACK*D)
  out_ref[...] = out.astype(out_ref.dtype)


def _batch_tiling(b):
  """TB (multiple of _ROUND, <= _TB_CAP) and num_blocks (even when splitting)."""
  b_round = _ROUND * pl.cdiv(b, _ROUND)
  if b_round <= _TB_CAP:
    return b_round, 1                  # whole batch in one tile: no forced split
  nb = pl.cdiv(b_round, _TB_CAP)
  if nb % 2:
    nb += 1                            # balanced v7x megacore split
  tb = _ROUND * pl.cdiv(pl.cdiv(b_round, nb), _ROUND)
  nb = pl.cdiv(b_round, tb)
  return tb, nb


@functools.partial(jax.jit, static_argnames=("input_dtype",))
def multi_head_target_attention(target_item, history_sequence, mask,
                                w_q, w_k, w_v, w_o,
                                input_dtype=jnp.bfloat16):
  """target_item: (B, D), history_sequence: (B, L, D), mask: (B, L)."""
  b, d = target_item.shape
  _, l, _ = history_sequence.shape
  a = w_q.shape[1]
  h = NUM_HEADS
  hd = a // h
  la = l * a
  lh = h * l
  f32 = jnp.float32

  # --- constant selection / weight matrices (tiny; built per trace) --------
  eye_l = jnp.eye(l, dtype=f32)
  sel = (jnp.arange(a)[:, None] // hd == jnp.arange(h)[None, :]).astype(f32)  # (A, H)
  # S[l*A+a, h*L+l2] = [l==l2]*[head(a)==h]/scale
  s_mat = (eye_l[:, None, None, :] * sel[None, :, :, None]).reshape(la, lh) / SCALE
  # E[h*L+l, l2*A+a] = [l==l2]*[head(a)==h]
  e_mat = (eye_l[None, :, :, None] * sel.T[:, None, None, :]).reshape(lh, la)
  # SumH[h*L+l, h2*L+l2] = [h==h2]
  sum_h = jnp.kron(jnp.eye(h, dtype=f32), jnp.ones((l, l), f32))
  wq_t = jnp.tile(w_q.astype(f32), (1, l))                               # (D, L*A)
  wkv = jnp.concatenate(
      [jnp.kron(jnp.eye(l, dtype=f32), w_k.astype(f32)),
       jnp.kron(jnp.eye(l, dtype=f32), w_v.astype(f32))], axis=1)        # (L*D, 2*L*A)
  wo_exp = jnp.tile(w_o.astype(f32), (l, 1))                             # (L*A, D)
  wo_big = jnp.kron(jnp.eye(PACK, dtype=f32), wo_exp)                    # (PACK*L*A, PACK*D)

  # --- mask as an additive -1e9 bias in the (H*L)-lane layout ---------------
  bias = jnp.where(mask[:, None, :] == 0, f32(MASK_FILL), f32(0.0))      # (B, 1, L)
  bias = jnp.broadcast_to(bias, (b, h, l)).reshape(b, lh)

  # --- lane-dense, bf16 streamed inputs (weights & math stay f32) ----------
  tgt_in = target_item.astype(input_dtype)
  hist_in = history_sequence.reshape(b, l * d).astype(input_dtype)       # free reshape
  bias_in = bias.astype(input_dtype)

  tb, nb = _batch_tiling(b)
  b_pad = tb * nb
  if b_pad != b:
    pad = b_pad - b
    tgt_in = jnp.pad(tgt_in, ((0, pad), (0, 0)))
    hist_in = jnp.pad(hist_in, ((0, pad), (0, 0)))
    bias_in = jnp.pad(bias_in, ((0, pad), (0, 0)))   # pad rows: zero data, no mask

  tbp = tb // PACK
  out_packed = pl.pallas_call(
      _mhta_kernel,
      out_shape=jax.ShapeDtypeStruct((nb * tbp, PACK * d), jnp.float32),
      grid_spec=pltpu.PrefetchScalarGridSpec(
          num_scalar_prefetch=0,
          grid=(nb,),
          in_specs=[
              pl.BlockSpec((tb, d), lambda i: (i, 0)),           # target
              pl.BlockSpec((tb, l * d), lambda i: (i, 0)),       # history (B, L*D)
              pl.BlockSpec((tb, lh), lambda i: (i, 0)),          # mask bias (B, H*L)
              pl.BlockSpec((d, la), lambda i: (0, 0)),           # W_q tiled
              pl.BlockSpec((l * d, 2 * la), lambda i: (0, 0)),   # [W_k|W_v] block-diag
              pl.BlockSpec((la, lh), lambda i: (0, 0)),          # S
              pl.BlockSpec((lh, lh), lambda i: (0, 0)),          # SumH
              pl.BlockSpec((lh, la), lambda i: (0, 0)),          # E
              pl.BlockSpec((PACK * la, PACK * d), lambda i: (0, 0)),  # W_o (big)
          ],
          out_specs=pl.BlockSpec((tbp, PACK * d), lambda i: (i, 0)),
      ),
      compiler_params=pltpu.CompilerParams(
          dimension_semantics=("parallel",),
          vmem_limit_bytes=32 * 1024 * 1024),
  )(tgt_in, hist_in, bias_in, wq_t, wkv, s_mat, sum_h, e_mat, wo_big)

  # Un-pack the lane-dense (nb*TB/PACK, PACK*D) result back to (B, D) (XLA-side).
  out = (out_packed.reshape(nb, tbp, PACK, d)
         .transpose(0, 2, 1, 3)
         .reshape(b_pad, d))
  return out[:b]


def _reference(target_item, history_sequence, mask, w_q, w_k, w_v, w_o):
  """Pure-JAX re-implementation of the PyTorch forward (for verification)."""
  b, _ = target_item.shape
  l = history_sequence.shape[1]
  q = target_item @ w_q
  k = history_sequence @ w_k
  v = history_sequence @ w_v
  qh = q.reshape(b, 1, NUM_HEADS, HEAD_DIM).transpose(0, 2, 1, 3)
  kh = k.reshape(b, l, NUM_HEADS, HEAD_DIM).transpose(0, 2, 1, 3)
  vh = v.reshape(b, l, NUM_HEADS, HEAD_DIM).transpose(0, 2, 1, 3)
  scores = jnp.einsum('bhqd,bhkd->bhqk', qh, kh) / SCALE
  m = mask.astype(jnp.float32).reshape(b, 1, 1, l)
  scores = jnp.where(m == 0.0, MASK_FILL, scores)
  p = jax.nn.softmax(scores, axis=-1)
  out = jnp.einsum('bhqk,bhkd->bhqd', p, vh)
  out = out.transpose(0, 2, 1, 3).reshape(b, NUM_HEADS * HEAD_DIM)
  return out @ w_o


if __name__ == "__main__":
  key = jax.random.PRNGKey(0)
  k_t, k_h, k_m, k_q, k_k, k_v, k_o = jax.random.split(key, 7)

  target = jax.random.normal(k_t, (BATCH, INPUT_DIM), dtype=jnp.float32)
  history = jax.random.normal(k_h, (BATCH, SEQ_LEN, INPUT_DIM), dtype=jnp.float32)
  mask = (jax.random.uniform(k_m, (BATCH, SEQ_LEN)) > 0.3).astype(jnp.int32)
  mask = mask.at[:, 0].set(1)   # keep at least one valid position per row

  # Deterministic "Linear(bias=False)" weights, stored as (in, out).
  def init_w(k, shape, fan_in):
    bound = 1.0 / (fan_in ** 0.5)
    return jax.random.uniform(k, shape, jnp.float32, -bound, bound)

  w_q = init_w(k_q, (INPUT_DIM, ATTN_DIM), INPUT_DIM)
  w_k = init_w(k_k, (INPUT_DIM, ATTN_DIM), INPUT_DIM)
  w_v = init_w(k_v, (INPUT_DIM, ATTN_DIM), INPUT_DIM)
  w_o = init_w(k_o, (ATTN_DIM, INPUT_DIM), ATTN_DIM)

  ref = _reference(target, history, mask, w_q, w_k, w_v, w_o)

  # f32-input path: tight check that the restructured math is exact.
  out32 = multi_head_target_attention(target, history, mask, w_q, w_k, w_v, w_o,
                                      input_dtype=jnp.float32)
  out32 = jax.block_until_ready(out32)
  assert out32.shape == (BATCH, INPUT_DIM)
  assert jnp.allclose(out32, ref, rtol=1e-4, atol=1e-5), "f32 mismatch vs reference"

  # Default bf16-streamed path (perf config); only input rounding differs.
  out = multi_head_target_attention(target, history, mask, w_q, w_k, w_v, w_o)
  out = jax.block_until_ready(out)
  assert out.shape == (BATCH, INPUT_DIM)
  assert jnp.allclose(out, ref, rtol=2e-2, atol=2e-2), "bf16 mismatch vs reference"

  # TODO(synk): dropout_rate>0 (train-mode attention dropout) and the
  # use_qkvo=False / use_scale=False config branches are not implemented;
  # this kernel covers the default inference forward (dropout=0, qkvo, scale).
  print("KERNEL_OK")
</pallas_src>

<mosaic_0001>
module attributes {stable_mosaic.version = 11 : i64} {
  func.func @_mhta_kernel(%arg0: i32, %arg1: memref<32x32xf32, #tpu.memory_space<vmem>>, %arg2: memref<32x256xf32, #tpu.memory_space<vmem>>, %arg3: memref<32x16xf32, #tpu.memory_space<vmem>>, %arg4: memref<32x256xf32, #tpu.memory_space<vmem>>, %arg5: memref<256x512xf32, #tpu.memory_space<vmem>>, %arg6: memref<256x16xf32, #tpu.memory_space<vmem>>, %arg7: memref<16x16xf32, #tpu.memory_space<vmem>>, %arg8: memref<16x256xf32, #tpu.memory_space<vmem>>, %arg9: memref<1024x128xf32, #tpu.memory_space<vmem>>, %arg10: memref<8x128xf32, #tpu.memory_space<vmem>>) attributes {dimension_semantics = [#tpu.dimension_semantics<parallel>], iteration_bounds = array<i64: 1>, scalar_prefetch = 0 : i64, scratch_operands = 0 : i64, tpu.core_type = #tpu.core_type<tc>, window_params = [{transform_indices = @transform_0, window_bounds = array<i64: 32, 32>}, {transform_indices = @transform_1, window_bounds = array<i64: 32, 256>}, {transform_indices = @transform_2, window_bounds = array<i64: 32, 16>}, {pipeline_mode = #tpu.pipeline_mode<synchronous>, transform_indices = @transform_3, window_bounds = array<i64: 32, 256>}, {pipeline_mode = #tpu.pipeline_mode<synchronous>, transform_indices = @transform_4, window_bounds = array<i64: 256, 512>}, {pipeline_mode = #tpu.pipeline_mode<synchronous>, transform_indices = @transform_5, window_bounds = array<i64: 256, 16>}, {pipeline_mode = #tpu.pipeline_mode<synchronous>, transform_indices = @transform_6, window_bounds = array<i64: 16, 16>}, {pipeline_mode = #tpu.pipeline_mode<synchronous>, transform_indices = @transform_7, window_bounds = array<i64: 16, 256>}, {pipeline_mode = #tpu.pipeline_mode<synchronous>, transform_indices = @transform_8, window_bounds = array<i64: 1024, 128>}, {transform_indices = @transform_9, window_bounds = array<i64: 8, 128>}]} {
    %c0 = arith.constant 0 : index
    %c0_0 = arith.constant 0 : index
    %0 = vector.load %arg1[%c0, %c0_0] : memref<32x32xf32, #tpu.memory_space<vmem>>, vector<32x32xf32>
    %c0_1 = arith.constant 0 : index
    %c0_2 = arith.constant 0 : index
    %1 = vector.load %arg4[%c0_1, %c0_2] : memref<32x256xf32, #tpu.memory_space<vmem>>, vector<32x256xf32>
    %cst = arith.constant dense<0.000000e+00> : vector<32x256xf32>
    %2 = tpu.matmul %0, %1, %cst {dimension_numbers = #tpu.dot_dimension_numbers<[1], [0], [0], [1], [0, 0, 1, 1], [], []>} : vector<32x32xf32>, vector<32x256xf32>, vector<32x256xf32> -> vector<32x256xf32>
    %c0_3 = arith.constant 0 : index
    %c0_4 = arith.constant 0 : index
    %3 = vector.load %arg2[%c0_3, %c0_4] : memref<32x256xf32, #tpu.memory_space<vmem>>, vector<32x256xf32>
    %c0_5 = arith.constant 0 : index
    %c0_6 = arith.constant 0 : index
    %4 = vector.load %arg5[%c0_5, %c0_6] : memref<256x512xf32, #tpu.memory_space<vmem>>, vector<256x512xf32>
    %cst_7 = arith.constant dense<0.000000e+00> : vector<32x512xf32>
    %5 = tpu.matmul %3, %4, %cst_7 {dimension_numbers = #tpu.dot_dimension_numbers<[1], [0], [0], [1], [0, 0, 1, 1], [], []>} : vector<32x256xf32>, vector<256x512xf32>, vector<32x512xf32> -> vector<32x512xf32>
    %6 = vector.extract_strided_slice %5 {offsets = [0, 0], sizes = [32, 256], strides = [1, 1]} : vector<32x512xf32> to vector<32x256xf32>
    %7 = vector.extract_strided_slice %5 {offsets = [0, 256], sizes = [32, 256], strides = [1, 1]} : vector<32x512xf32> to vector<32x256xf32>
    %8 = arith.mulf %6, %2 : vector<32x256xf32>
    %c0_8 = arith.constant 0 : index
    %c0_9 = arith.constant 0 : index
    %9 = vector.load %arg6[%c0_8, %c0_9] : memref<256x16xf32, #tpu.memory_space<vmem>>, vector<256x16xf32>
    %cst_10 = arith.constant dense<0.000000e+00> : vector<32x16xf32>
    %10 = tpu.matmul %8, %9, %cst_10 {dimension_numbers = #tpu.dot_dimension_numbers<[1], [0], [0], [1], [0, 0, 1, 1], [], []>} : vector<32x256xf32>, vector<256x16xf32>, vector<32x16xf32> -> vector<32x16xf32>
    %c0_11 = arith.constant 0 : index
    %c0_12 = arith.constant 0 : index
    %11 = vector.load %arg3[%c0_11, %c0_12] : memref<32x16xf32, #tpu.memory_space<vmem>>, vector<32x16xf32>
    %12 = arith.addf %10, %11 : vector<32x16xf32>
    %13 = tpu.iota {dimensions = array<i32: 1>} : vector<1x16xi32>
    %c0_i32 = arith.constant 0 : i32
    %14 = vector.broadcast %c0_i32 : i32 to vector<1x16xi32>
    %15 = arith.cmpi sge, %13, %14 : vector<1x16xi32>
    %c8_i32 = arith.constant 8 : i32
    %16 = vector.broadcast %c8_i32 : i32 to vector<1x16xi32>
    %17 = arith.cmpi slt, %13, %16 : vector<1x16xi32>
    %18 = arith.andi %15, %17 : vector<1x16xi1>
    %cst_13 = arith.constant -1.000000e+30 : f32
    %19 = vector.shape_cast %18 : vector<1x16xi1> to vector<1x16xi1>
    %20 = vector.broadcast %19 : vector<1x16xi1> to vector<32x16xi1>
    %21 = vector.broadcast %cst_13 : f32 to vector<32x16xf32>
    %22 = arith.select %20, %12, %21 : vector<32x16xi1>, vector<32x16xf32>
    %cst_14 = arith.constant dense<0xFF800000> : vector<32xf32>
    %23 = vector.multi_reduction <maximumf>, %22, %cst_14 [1] : vector<32x16xf32> to vector<32xf32>
    %24 = vector.shape_cast %23 : vector<32xf32> to vector<32x1xf32>
    %c8_i32_15 = arith.constant 8 : i32
    %25 = vector.broadcast %c8_i32_15 : i32 to vector<1x16xi32>
    %26 = arith.cmpi sge, %13, %25 : vector<1x16xi32>
    %c16_i32 = arith.constant 16 : i32
    %27 = vector.broadcast %c16_i32 : i32 to vector<1x16xi32>
    %28 = arith.cmpi slt, %13, %27 : vector<1x16xi32>
    %29 = arith.andi %26, %28 : vector<1x16xi1>
    %cst_16 = arith.constant -1.000000e+30 : f32
    %30 = vector.shape_cast %29 : vector<1x16xi1> to vector<1x16xi1>
    %31 = vector.broadcast %30 : vector<1x16xi1> to vector<32x16xi1>
    %32 = vector.broadcast %cst_16 : f32 to vector<32x16xf32>
    %33 = arith.select %31, %12, %32 : vector<32x16xi1>, vector<32x16xf32>
    %cst_17 = arith.constant dense<0xFF800000> : vector<32xf32>
    %34 = vector.multi_reduction <maximumf>, %33, %cst_17 [1] : vector<32x16xf32> to vector<32xf32>
    %35 = vector.shape_cast %34 : vector<32xf32> to vector<32x1xf32>
    %36 = vector.shape_cast %29 : vector<1x16xi1> to vector<1x16xi1>
    %37 = vector.broadcast %36 : vector<1x16xi1> to vector<32x16xi1>
    %38 = vector.shape_cast %35 : vector<32x1xf32> to vector<32x1xf32>
    %39 = vector.broadcast %38 : vector<32x1xf32> to vector<32x16xf32>
    %40 = vector.shape_cast %24 : vector<32x1xf32> to vector<32x1xf32>
    %41 = vector.broadcast %40 : vector<32x1xf32> to vector<32x16xf32>
    %42 = arith.select %37, %39, %41 : vector<32x16xi1>, vector<32x16xf32>
    %43 = arith.subf %12, %42 : vector<32x16xf32>
    %44 = math.exp %43 : vector<32x16xf32>
    %c0_18 = arith.constant 0 : index
    %c0_19 = arith.constant 0 : index
    %45 = vector.load %arg7[%c0_18, %c0_19] : memref<16x16xf32, #tpu.memory_space<vmem>>, vector<16x16xf32>
    %cst_20 = arith.constant dense<0.000000e+00> : vector<32x16xf32>
    %46 = tpu.matmul %44, %45, %cst_20 {dimension_numbers = #tpu.dot_dimension_numbers<[1], [0], [0], [1], [0, 0, 1, 1], [], []>} : vector<32x16xf32>, vector<16x16xf32>, vector<32x16xf32> -> vector<32x16xf32>
    %47 = tpu.reciprocal %46 : vector<32x16xf32> -> vector<32x16xf32>
    %48 = arith.mulf %44, %47 : vector<32x16xf32>
    %c0_21 = arith.constant 0 : index
    %c0_22 = arith.constant 0 : index
    %49 = vector.load %arg8[%c0_21, %c0_22] : memref<16x256xf32, #tpu.memory_space<vmem>>, vector<16x256xf32>
    %cst_23 = arith.constant dense<0.000000e+00> : vector<32x256xf32>
    %50 = tpu.matmul %48, %49, %cst_23 {dimension_numbers = #tpu.dot_dimension_numbers<[1], [0], [0], [1], [0, 0, 1, 1], [], []>} : vector<32x16xf32>, vector<16x256xf32>, vector<32x256xf32> -> vector<32x256xf32>
    %51 = arith.mulf %50, %7 : vector<32x256xf32>
    %52 = vector.extract_strided_slice %51 {offsets = [0, 0], sizes = [8, 256], strides = [1, 1]} : vector<32x256xf32> to vector<8x256xf32>
    %53 = vector.extract_strided_slice %51 {offsets = [8, 0], sizes = [8, 256], strides = [1, 1]} : vector<32x256xf32> to vector<8x256xf32>
    %54 = vector.extract_strided_slice %51 {offsets = [16, 0], sizes = [8, 256], strides = [1, 1]} : vector<32x256xf32> to vector<8x256xf32>
    %55 = vector.extract_strided_slice %51 {offsets = [24, 0], sizes = [8, 256], strides = [1, 1]} : vector<32x256xf32> to vector<8x256xf32>
    %56 = tpu.concatenate %52, %53, %54, %55 in 1 : vector<8x256xf32>, vector<8x256xf32>, vector<8x256xf32>, vector<8x256xf32> -> vector<8x1024xf32>
    %c0_24 = arith.constant 0 : index
    %c0_25 = arith.constant 0 : index
    %57 = vector.load %arg9[%c0_24, %c0_25] : memref<1024x128xf32, #tpu.memory_space<vmem>>, vector<1024x128xf32>
    %cst_26 = arith.constant dense<0.000000e+00> : vector<8x128xf32>
    %58 = tpu.matmul %56, %57, %cst_26 {dimension_numbers = #tpu.dot_dimension_numbers<[1], [0], [0], [1], [0, 0, 1, 1], [], []>} : vector<8x1024xf32>, vector<1024x128xf32>, vector<8x128xf32> -> vector<8x128xf32>
    %c0_27 = arith.constant 0 : index
    %c0_28 = arith.constant 0 : index
    %59 = vector.load %arg10[%c0_27, %c0_28] : memref<8x128xf32, #tpu.memory_space<vmem>>, vector<8x128xf32>
    tpu.vector_store %arg10[%c0_27, %c0_28], %58 {strides = array<i32>} : memref<8x128xf32, #tpu.memory_space<vmem>>, vector<8x128xf32>,
    return
  }
  func.func @transform_0(%arg0: i32) -> (i32, i32) {
    %c0_i32 = arith.constant 0 : i32
    %c0_i32_0 = arith.constant 0 : i32
    return %arg0, %c0_i32 : i32, i32
  }
  func.func @transform_1(%arg0: i32) -> (i32, i32) {
    %c0_i32 = arith.constant 0 : i32
    %c0_i32_0 = arith.constant 0 : i32
    return %arg0, %c0_i32 : i32, i32
  }
  func.func @transform_2(%arg0: i32) -> (i32, i32) {
    %c0_i32 = arith.constant 0 : i32
    %c0_i32_0 = arith.constant 0 : i32
    return %arg0, %c0_i32 : i32, i32
  }
  func.func @transform_3(%arg0: i32) -> (i32, i32) {
    %c0_i32 = arith.constant 0 : i32
    %c0_i32_0 = arith.constant 0 : i32
    %c0_i32_1 = arith.constant 0 : i32
    return %c0_i32, %c0_i32_0 : i32, i32
  }
  func.func @transform_4(%arg0: i32) -> (i32, i32) {
    %c0_i32 = arith.constant 0 : i32
    %c0_i32_0 = arith.constant 0 : i32
    %c0_i32_1 = arith.constant 0 : i32
    return %c0_i32, %c0_i32_0 : i32, i32
  }
  func.func @transform_5(%arg0: i32) -> (i32, i32) {
    %c0_i32 = arith.constant 0 : i32
    %c0_i32_0 = arith.constant 0 : i32
    %c0_i32_1 = arith.constant 0 : i32
    return %c0_i32, %c0_i32_0 : i32, i32
  }
  func.func @transform_6(%arg0: i32) -> (i32, i32) {
    %c0_i32 = arith.constant 0 : i32
    %c0_i32_0 = arith.constant 0 : i32
    %c0_i32_1 = arith.constant 0 : i32
    return %c0_i32, %c0_i32_0 : i32, i32
  }
  func.func @transform_7(%arg0: i32) -> (i32, i32) {
    %c0_i32 = arith.constant 0 : i32
    %c0_i32_0 = arith.constant 0 : i32
    %c0_i32_1 = arith.constant 0 : i32
    return %c0_i32, %c0_i32_0 : i32, i32
  }
  func.func @transform_8(%arg0: i32) -> (i32, i32) {
    %c0_i32 = arith.constant 0 : i32
    %c0_i32_0 = arith.constant 0 : i32
    %c0_i32_1 = arith.constant 0 : i32
    return %c0_i32, %c0_i32_0 : i32, i32
  }
  func.func @transform_9(%arg0: i32) -> (i32, i32) {
    %c0_i32 = arith.constant 0 : i32
    %c0_i32_0 = arith.constant 0 : i32
    return %arg0, %c0_i32 : i32, i32
  }
}

</mosaic_0001>

<llo_original>
// kernel: tile.14
$region0: #{tile.14}
  %s0 = inlined_call_operand.vmem [shape: f32[32,8,32], index: 0, kind: input, shape index: {}]
  %s1 = inlined_call_operand.vmem [shape: f32[32,256], index: 1, kind: output, shape index: {}]
  %v2 = vld [vmem:[%s0] ss:$4 sm:$0xff]
  %vm3 = vcmask 261120
  %4 = vst.msk [vmem:[%s1] ss:$8 sm:$0x3] %vm3, %v2
  %s5 = scalar_lea.vmem %s1, 4294967281
  %6 = vst.msk [vmem:[%s5] ss:$8 sm:$0xc] %vm3, %v2
  %s7 = scalar_lea.vmem %s1, 4294967266
  %8 = vst.msk [vmem:[%s7] ss:$8 sm:$0x30] %vm3, %v2
  %s9 = scalar_lea.vmem %s1, 4294967251
  %10 = vst.msk [vmem:[%s9] ss:$8 sm:$0xc0] %vm3, %v2
  %s11 = scalar_lea.vmem %s0, 32
  %v12 = vld [vmem:[%s11] ss:$4 sm:$0xff]
  %vm13 = vcmask 261120
  %s14 = scalar_lea.vmem %s1, 4
  %15 = vst.msk [vmem:[%s14] ss:$8 sm:$0x3] %vm13, %v12
  %s16 = scalar_lea.vmem %s1, 4294967285
  %17 = vst.msk [vmem:[%s16] ss:$8 sm:$0xc] %vm13, %v12
  %s18 = scalar_lea.vmem %s1, 4294967270
  %19 = vst.msk [vmem:[%s18] ss:$8 sm:$0x30] %vm13, %v12
  %s20 = scalar_lea.vmem %s1, 4294967255
  %21 = vst.msk [vmem:[%s20] ss:$8 sm:$0xc0] %vm13, %v12
  %s22 = scalar_lea.vmem %s0, 64
  %v23 = vld [vmem:[%s22] ss:$4 sm:$0xff]
  %vm24 = vcmask 261120
  %s25 = scalar_lea.vmem %s1, 16
  %26 = vst.msk [vmem:[%s25] ss:$8 sm:$0x3] %vm24, %v23
  %s27 = scalar_lea.vmem %s1, 1
  %28 = vst.msk [vmem:[%s27] ss:$8 sm:$0xc] %vm24, %v23
  %s29 = scalar_lea.vmem %s1, 4294967282
  %30 = vst.msk [vmem:[%s29] ss:$8 sm:$0x30] %vm24, %v23
  %s31 = scalar_lea.vmem %s1, 4294967267
  %32 = vst.msk [vmem:[%s31] ss:$8 sm:$0xc0] %vm24, %v23
  %s33 = scalar_lea.vmem %s0, 96
  %v34 = vld [vmem:[%s33] ss:$4 sm:$0xff]
  %vm35 = vcmask 261120
  %s36 = scalar_lea.vmem %s1, 20
  %37 = vst.msk [vmem:[%s36] ss:$8 sm:$0x3] %vm35, %v34
  %s38 = scalar_lea.vmem %s1, 5
  %39 = vst.msk [vmem:[%s38] ss:$8 sm:$0xc] %vm35, %v34
  %s40 = scalar_lea.vmem %s1, 4294967286
  %41 = vst.msk [vmem:[%s40] ss:$8 sm:$0x30] %vm35, %v34
  %s42 = scalar_lea.vmem %s1, 4294967271
  %43 = vst.msk [vmem:[%s42] ss:$8 sm:$0xc0] %vm35, %v34
  %s44 = scalar_lea.vmem %s0, 128
  %v45 = vld [vmem:[%s44] ss:$4 sm:$0xff]
  %vm46 = vcmask 261120
  %s47 = scalar_lea.vmem %s1, 32
  %48 = vst.msk [vmem:[%s47] ss:$8 sm:$0x3] %vm46, %v45
  %s49 = scalar_lea.vmem %s1, 17
  %50 = vst.msk [vmem:[%s49] ss:$8 sm:$0xc] %vm46, %v45
  %s51 = scalar_lea.vmem %s1, 2
  %52 = vst.msk [vmem:[%s51] ss:$8 sm:$0x30] %vm46, %v45
  %s53 = scalar_lea.vmem %s1, 4294967283
  %54 = vst.msk [vmem:[%s53] ss:$8 sm:$0xc0] %vm46, %v45
  %s55 = scalar_lea.vmem %s0, 160
  %v56 = vld [vmem:[%s55] ss:$4 sm:$0xff]
  %vm57 = vcmask 261120
  %s58 = scalar_lea.vmem %s1, 36
  %59 = vst.msk [vmem:[%s58] ss:$8 sm:$0x3] %vm57, %v56
  %s60 = scalar_lea.vmem %s1, 21
  %61 = vst.msk [vmem:[%s60] ss:$8 sm:$0xc] %vm57, %v56
  %s62 = scalar_lea.vmem %s1, 6
  %63 = vst.msk [vmem:[%s62] ss:$8 sm:$0x30] %vm57, %v56
  %s64 = scalar_lea.vmem %s1, 4294967287
  %65 = vst.msk [vmem:[%s64] ss:$8 sm:$0xc0] %vm57, %v56
  %s66 = scalar_lea.vmem %s0, 192
  %v67 = vld [vmem:[%s66] ss:$4 sm:$0xff]
  %vm68 = vcmask 261120
  %s69 = scalar_lea.vmem %s1, 48
  %70 = vst.msk [vmem:[%s69] ss:$8 sm:$0x3] %vm68, %v67
  %s71 = scalar_lea.vmem %s1, 33
  %72 = vst.msk [vmem:[%s71] ss:$8 sm:$0xc] %vm68, %v67
  %s73 = scalar_lea.vmem %s1, 18
  %74 = vst.msk [vmem:[%s73] ss:$8 sm:$0x30] %vm68, %v67
  %s75 = scalar_lea.vmem %s1, 3
  %76 = vst.msk [vmem:[%s75] ss:$8 sm:$0xc0] %vm68, %v67
  %s77 = scalar_lea.vmem %s0, 224
  %v78 = vld [vmem:[%s77] ss:$4 sm:$0xff]
  %vm79 = vcmask 261120
  %s80 = scalar_lea.vmem %s1, 52
  %81 = vst.msk [vmem:[%s80] ss:$8 sm:$0x3] %vm79, %v78
  %s82 = scalar_lea.vmem %s1, 37
  %83 = vst.msk [vmem:[%s82] ss:$8 sm:$0xc] %vm79, %v78
  %s84 = scalar_lea.vmem %s1, 22
  %85 = vst.msk [vmem:[%s84] ss:$8 sm:$0x30] %vm79, %v78
  %s86 = scalar_lea.vmem %s1, 7
  %87 = vst.msk [vmem:[%s86] ss:$8 sm:$0xc0] %vm79, %v78
  %s88 = scalar_lea.vmem %s0, 3
  %v89 = vld [vmem:[%s88] ss:$8 sm:$0xf]
  %s90 = scalar_lea.vmem %s0, 3
  %v91 = vld [vmem:[%s90] ss:$8 sm:$0xf0]
  %vm92 = vcmask 1047556
  %v93 = vsel %vm92, %v91, %v89
  %94 = vrot.lane.b32.xlu0 %v93, 96
  %v95 = vpop.permute.xlu0 %94
  %vm96 = vcmask 1048320
  %97 = vst.msk [vmem:[%s1] sm:$0xff] %vm96, %v95
  %s98 = scalar_lea.vmem %s0, 131
  %v99 = vld [vmem:[%s98] ss:$8 sm:$0xf]
  %s100 = scalar_lea.vmem %s0, 131
  %v101 = vld [vmem:[%s100] ss:$8 sm:$0xf0]
  %vm102 = vcmask 1047556
  %v103 = vsel %vm102, %v101, %v99
  %104 = vrot.lane.b32.xlu0 %v103, 96
  %v105 = vpop.permute.xlu0 %104
  %vm106 = vcmask 1048320
  %s107 = scalar_lea.vmem %s1, 32
  %108 = vst.msk [vmem:[%s107] sm:$0xff] %vm106, %v105
  %s109 = scalar_lea.vmem %s0, 7
  %v110 = vld [vmem:[%s109] ss:$8 sm:$0xf]
  %s111 = scalar_lea.vmem %s0, 7
  %v112 = vld [vmem:[%s111] ss:$8 sm:$0xf0]
  %vm113 = vcmask 1047556
  %v114 = vsel %vm113, %v112, %v110
  %115 = vrot.lane.b32.xlu0 %v114, 96
  %v116 = vpop.permute.xlu0 %115
  %vm117 = vcmask 1048320
  %s118 = scalar_lea.vmem %s1, 8
  %119 = vst.msk [vmem:[%s118] sm:$0xff] %vm117, %v116
  %s120 = scalar_lea.vmem %s0, 135
  %v121 = vld [vmem:[%s120] ss:$8 sm:$0xf]
  %s122 = scalar_lea.vmem %s0, 135
  %v123 = vld [vmem:[%s122] ss:$8 sm:$0xf0]
  %vm124 = vcmask 1047556
  %v125 = vsel %vm124, %v123, %v121
  %126 = vrot.lane.b32.xlu0 %v125, 96
  %v127 = vpop.permute.xlu0 %126
  %vm128 = vcmask 1048320
  %s129 = scalar_lea.vmem %s1, 40
  %130 = vst.msk [vmem:[%s129] sm:$0xff] %vm128, %v127
  %s131 = scalar_lea.vmem %s0, 67
  %v132 = vld [vmem:[%s131] ss:$8 sm:$0xf]
  %s133 = scalar_lea.vmem %s0, 67
  %v134 = vld [vmem:[%s133] ss:$8 sm:$0xf0]
  %vm135 = vcmask 1047556
  %v136 = vsel %vm135, %v134, %v132
  %137 = vrot.lane.b32.xlu0 %v136, 96
  %v138 = vpop.permute.xlu0 %137
  %vm139 = vcmask 1048320
  %s140 = scalar_lea.vmem %s1, 16
  %141 = vst.msk [vmem:[%s140] sm:$0xff] %vm139, %v138
  %s142 = scalar_lea.vmem %s0, 195
  %v143 = vld [vmem:[%s142] ss:$8 sm:$0xf]
  %s144 = scalar_lea.vmem %s0, 195
  %v145 = vld [vmem:[%s144] ss:$8 sm:$0xf0]
  %vm146 = vcmask 1047556
  %v147 = vsel %vm146, %v145, %v143
  %148 = vrot.lane.b32.xlu0 %v147, 96
  %v149 = vpop.permute.xlu0 %148
  %vm150 = vcmask 1048320
  %s151 = scalar_lea.vmem %s1, 48
  %152 = vst.msk [vmem:[%s151] sm:$0xff] %vm150, %v149
  %s153 = scalar_lea.vmem %s0, 71
  %v154 = vld [vmem:[%s153] ss:$8 sm:$0xf]
  %s155 = scalar_lea.vmem %s0, 71
  %v156 = vld [vmem:[%s155] ss:$8 sm:$0xf0]
  %vm157 = vcmask 1047556
  %v158 = vsel %vm157, %v156, %v154
  %159 = vrot.lane.b32.xlu0 %v158, 96
  %v160 = vpop.permute.xlu0 %159
  %vm161 = vcmask 1048320
  %s162 = scalar_lea.vmem %s1, 24
  %163 = vst.msk [vmem:[%s162] sm:$0xff] %vm161, %v160
  %s164 = scalar_lea.vmem %s0, 199
  %v165 = vld [vmem:[%s164] ss:$8 sm:$0xf]
  %s166 = scalar_lea.vmem %s0, 199
  %v167 = vld [vmem:[%s166] ss:$8 sm:$0xf0]
  %vm168 = vcmask 1047556
  %v169 = vsel %vm168, %v167, %v165
  %170 = vrot.lane.b32.xlu0 %v169, 96
  %v171 = vpop.permute.xlu0 %170
  %vm172 = vcmask 1048320
  %s173 = scalar_lea.vmem %s1, 56
  %174 = vst.msk [vmem:[%s173] sm:$0xff] %vm172, %v171
  %s175 = scalar_lea.vmem %s0, 2
  %v176 = vld [vmem:[%s175] ss:$8 sm:$0xf]
  %s177 = scalar_lea.vmem %s0, 2
  %v178 = vld [vmem:[%s177] ss:$8 sm:$0xf0]
  %vm179 = vcmask 1047556
  %v180 = vsel %vm179, %v178, %v176
  %181 = vrot.lane.b32.xlu0 %v180, 64
  %v182 = vpop.permute.xlu0 %181
  %vm183 = vcmask 785920
  %184 = vst.msk [vmem:[%s1] sm:$0xff] %vm183, %v182
  %s185 = scalar_lea.vmem %s0, 130
  %v186 = vld [vmem:[%s185] ss:$8 sm:$0xf]
  %s187 = scalar_lea.vmem %s0, 130
  %v188 = vld [vmem:[%s187] ss:$8 sm:$0xf0]
  %vm189 = vcmask 1047556
  %v190 = vsel %vm189, %v188, %v186
  %191 = vrot.lane.b32.xlu0 %v190, 64
  %v192 = vpop.permute.xlu0 %191
  %vm193 = vcmask 785920
  %s194 = scalar_lea.vmem %s1, 32
  %195 = vst.msk [vmem:[%s194] sm:$0xff] %vm193, %v192
  %s196 = scalar_lea.vmem %s0, 6
  %v197 = vld [vmem:[%s196] ss:$8 sm:$0xf]
  %s198 = scalar_lea.vmem %s0, 6
  %v199 = vld [vmem:[%s198] ss:$8 sm:$0xf0]
  %vm200 = vcmask 1047556
  %v201 = vsel %vm200, %v199, %v197
  %202 = vrot.lane.b32.xlu0 %v201, 64
  %v203 = vpop.permute.xlu0 %202
  %vm204 = vcmask 785920
  %s205 = scalar_lea.vmem %s1, 8
  %206 = vst.msk [vmem:[%s205] sm:$0xff] %vm204, %v203
  %s207 = scalar_lea.vmem %s0, 134
  %v208 = vld [vmem:[%s207] ss:$8 sm:$0xf]
  %s209 = scalar_lea.vmem %s0, 134
  %v210 = vld [vmem:[%s209] ss:$8 sm:$0xf0]
  %vm211 = vcmask 1047556
  %v212 = vsel %vm211, %v210, %v208
  %213 = vrot.lane.b32.xlu0 %v212, 64
  %v214 = vpop.permute.xlu0 %213
  %vm215 = vcmask 785920
  %s216 = scalar_lea.vmem %s1, 40
  %217 = vst.msk [vmem:[%s216] sm:$0xff] %vm215, %v214
  %s218 = scalar_lea.vmem %s0, 66
  %v219 = vld [vmem:[%s218] ss:$8 sm:$0xf]
  %s220 = scalar_lea.vmem %s0, 66
  %v221 = vld [vmem:[%s220] ss:$8 sm:$0xf0]
  %vm222 = vcmask 1047556
  %v223 = vsel %vm222, %v221, %v219
  %224 = vrot.lane.b32.xlu0 %v223, 64
  %v225 = vpop.permute.xlu0 %224
  %vm226 = vcmask 785920
  %s227 = scalar_lea.vmem %s1, 16
  %228 = vst.msk [vmem:[%s227] sm:$0xff] %vm226, %v225
  %s229 = scalar_lea.vmem %s0, 194
  %v230 = vld [vmem:[%s229] ss:$8 sm:$0xf]
  %s231 = scalar_lea.vmem %s0, 194
  %v232 = vld [vmem:[%s231] ss:$8 sm:$0xf0]
  %vm233 = vcmask 1047556
  %v234 = vsel %vm233, %v232, %v230
  %235 = vrot.lane.b32.xlu0 %v234, 64
  %v236 = vpop.permute.xlu0 %235
  %vm237 = vcmask 785920
  %s238 = scalar_lea.vmem %s1, 48
  %239 = vst.msk [vmem:[%s238] sm:$0xff] %vm237, %v236
  %s240 = scalar_lea.vmem %s0, 70
  %v241 = vld [vmem:[%s240] ss:$8 sm:$0xf]
  %s242 = scalar_lea.vmem %s0, 70
  %v243 = vld [vmem:[%s242] ss:$8 sm:$0xf0]
  %vm244 = vcmask 1047556
  %v245 = vsel %vm244, %v243, %v241
  %246 = vrot.lane.b32.xlu0 %v245, 64
  %v247 = vpop.permute.xlu0 %246
  %vm248 = vcmask 785920
  %s249 = scalar_lea.vmem %s1, 24
  %250 = vst.msk [vmem:[%s249] sm:$0xff] %vm248, %v247
  %s251 = scalar_lea.vmem %s0, 198
  %v252 = vld [vmem:[%s251] ss:$8 sm:$0xf]
  %s253 = scalar_lea.vmem %s0, 198
  %v254 = vld [vmem:[%s253] ss:$8 sm:$0xf0]
  %vm255 = vcmask 1047556
  %v256 = vsel %vm255, %v254, %v252
  %257 = vrot.lane.b32.xlu0 %v256, 64
  %v258 = vpop.permute.xlu0 %257
  %vm259 = vcmask 785920
  %s260 = scalar_lea.vmem %s1, 56
  %261 = vst.msk [vmem:[%s260] sm:$0xff] %vm259, %v258
  %s262 = scalar_lea.vmem %s0, 1
  %v263 = vld [vmem:[%s262] ss:$8 sm:$0xf]
  %s264 = scalar_lea.vmem %s0, 1
  %v265 = vld [vmem:[%s264] ss:$8 sm:$0xf0]
  %vm266 = vcmask 1047556
  %v267 = vsel %vm266, %v265, %v263
  %268 = vrot.lane.b32.xlu0 %v267, 32
  %v269 = vpop.permute.xlu0 %268
  %vm270 = vcmask 523520
  %271 = vst.msk [vmem:[%s1] sm:$0xff] %vm270, %v269
  %s272 = scalar_lea.vmem %s0, 129
  %v273 = vld [vmem:[%s272] ss:$8 sm:$0xf]
  %s274 = scalar_lea.vmem %s0, 129
  %v275 = vld [vmem:[%s274] ss:$8 sm:$0xf0]
  %vm276 = vcmask 1047556
  %v277 = vsel %vm276, %v275, %v273
  %278 = vrot.lane.b32.xlu0 %v277, 32
  %v279 = vpop.permute.xlu0 %278
  %vm280 = vcmask 523520
  %s281 = scalar_lea.vmem %s1, 32
  %282 = vst.msk [vmem:[%s281] sm:$0xff] %vm280, %v279
  %s283 = scalar_lea.vmem %s0, 5
  %v284 = vld [vmem:[%s283] ss:$8 sm:$0xf]
  %s285 = scalar_lea.vmem %s0, 5
  %v286 = vld [vmem:[%s285] ss:$8 sm:$0xf0]
  %vm287 = vcmask 1047556
  %v288 = vsel %vm287, %v286, %v284
  %289 = vrot.lane.b32.xlu0 %v288, 32
  %v290 = vpop.permute.xlu0 %289
  %vm291 = vcmask 523520
  %s292 = scalar_lea.vmem %s1, 8
  %293 = vst.msk [vmem:[%s292] sm:$0xff] %vm291, %v290
  %s294 = scalar_lea.vmem %s0, 133
  %v295 = vld [vmem:[%s294] ss:$8 sm:$0xf]
  %s296 = scalar_lea.vmem %s0, 133
  %v297 = vld [vmem:[%s296] ss:$8 sm:$0xf0]
  %vm298 = vcmask 1047556
  %v299 = vsel %vm298, %v297, %v295
  %300 = vrot.lane.b32.xlu0 %v299, 32
  %v301 = vpop.permute.xlu0 %300
  %vm302 = vcmask 523520
  %s303 = scalar_lea.vmem %s1, 40
  %304 = vst.msk [vmem:[%s303] sm:$0xff] %vm302, %v301
  %s305 = scalar_lea.vmem %s0, 65
  %v306 = vld [vmem:[%s305] ss:$8 sm:$0xf]
  %s307 = scalar_lea.vmem %s0, 65
  %v308 = vld [vmem:[%s307] ss:$8 sm:$0xf0]
  %vm309 = vcmask 1047556
  %v310 = vsel %vm309, %v308, %v306
  %311 = vrot.lane.b32.xlu0 %v310, 32
  %v312 = vpop.permute.xlu0 %311
  %vm313 = vcmask 523520
  %s314 = scalar_lea.vmem %s1, 16
  %315 = vst.msk [vmem:[%s314] sm:$0xff] %vm313, %v312
  %s316 = scalar_lea.vmem %s0, 193
  %v317 = vld [vmem:[%s316] ss:$8 sm:$0xf]
  %s318 = scalar_lea.vmem %s0, 193
  %v319 = vld [vmem:[%s318] ss:$8 sm:$0xf0]
  %vm320 = vcmask 1047556
  %v321 = vsel %vm320, %v319, %v317
  %322 = vrot.lane.b32.xlu0 %v321, 32
  %v323 = vpop.permute.xlu0 %322
  %vm324 = vcmask 523520
  %s325 = scalar_lea.vmem %s1, 48
  %326 = vst.msk [vmem:[%s325] sm:$0xff] %vm324, %v323
  %s327 = scalar_lea.vmem %s0, 69
  %v328 = vld [vmem:[%s327] ss:$8 sm:$0xf]
  %s329 = scalar_lea.vmem %s0, 69
  %v330 = vld [vmem:[%s329] ss:$8 sm:$0xf0]
  %vm331 = vcmask 1047556
  %v332 = vsel %vm331, %v330, %v328
  %333 = vrot.lane.b32.xlu0 %v332, 32
  %v334 = vpop.permute.xlu0 %333
  %vm335 = vcmask 523520
  %s336 = scalar_lea.vmem %s1, 24
  %337 = vst.msk [vmem:[%s336] sm:$0xff] %vm335, %v334
  %s338 = scalar_lea.vmem %s0, 197
  %v339 = vld [vmem:[%s338] ss:$8 sm:$0xf]
  %s340 = scalar_lea.vmem %s0, 197
  %v341 = vld [vmem:[%s340] ss:$8 sm:$0xf0]
  %vm342 = vcmask 1047556
  %v343 = vsel %vm342, %v341, %v339
  %344 = vrot.lane.b32.xlu0 %v343, 32
  %v345 = vpop.permute.xlu0 %344
  %vm346 = vcmask 523520
  %s347 = scalar_lea.vmem %s1, 56
  %348 = vst.msk [vmem:[%s347] sm:$0xff] %vm346, %v345

// kernel: multi_head_target_attention.1
$region0: #{multi_head_target_attention.1}
  #allocation0 [shape = 'u32[]', space=smem, size = 0x4, offset = 0x4, fixed_abs, tag = 'smem constant byte address 0x4 - core index']
  #allocation1 [shape = 'u32[144,128]{1,0:T(1,128)}', space=vmem, size = 0x12000, scoped, tag = 'internal scratch']
  %s0 = inlined_call_operand.vmem [shape: f32[32,32], index: 0, kind: input, shape index: {}]
  %s1 = inlined_call_operand.vmem [shape: f32[32,256], index: 1, kind: input, shape index: {}]
  %s2 = inlined_call_operand.vmem [shape: f32[32,16], index: 2, kind: input, shape index: {}]
  %s3 = inlined_call_operand.vmem [shape: f32[32,256], index: 3, kind: input, shape index: {}]
  %s4 = inlined_call_operand.vmem [shape: f32[256,512], index: 4, kind: input, shape index: {}]
  %s5 = inlined_call_operand.vmem [shape: f32[256,16], index: 5, kind: input, shape index: {}]
  %s6 = inlined_call_operand.vmem [shape: f32[16,16], index: 6, kind: input, shape index: {}]
  %s7 = inlined_call_operand.vmem [shape: f32[16,256], index: 7, kind: input, shape index: {}]
  %s8 = inlined_call_operand.vmem [shape: f32[1024,128], index: 8, kind: input, shape index: {}]
  %s9 = inlined_call_operand.vmem [shape: f32[8,128], index: 9, kind: output, shape index: {}]
  %s10 = sld [smem:[#allocation0]]
  $region46: #{multi_head_target_attention.1} parent=0
    _
  %s12 = ssub.s32 1, %s10
  %s13 = scalar_select 0, %s12, %s10
  // Predicated region
  $region2: #{multi_head_target_attention.1} parent=0 // pred_check
    _
  $region3: #{multi_head_target_attention.1} parent=0 // pred_check_branch
    %15 = sbr.rel (0) target = $region5
  $region4: #{multi_head_target_attention.1} parent=0 // pred_region
    _
  $region5: #{multi_head_target_attention.1} parent=0 // pred_fallthru
    _
  // Predicated region
  $region6: #{multi_head_target_attention.1} parent=0 // pred_check
    _
  $region7: #{multi_head_target_attention.1} parent=0 // pred_check_branch
    %17 = sbr.rel (0) target = $region9
  $region8: #{multi_head_target_attention.1} parent=0 // pred_region
    _
  $region9: #{multi_head_target_attention.1} parent=0 // pred_fallthru
    _
  // Predicated region
  $region10: #{multi_head_target_attention.1} parent=0 // pred_check
    _
  $region11: #{multi_head_target_attention.1} parent=0 // pred_check_branch
    %19 = sbr.rel (0) target = $region13
  $region12: #{multi_head_target_attention.1} parent=0 // pred_region
    _
  $region13: #{multi_head_target_attention.1} parent=0 // pred_fallthru
    _
  // Predicated region
  $region14: #{multi_head_target_attention.1} parent=0 // pred_check
    _
  $region15: #{multi_head_target_attention.1} parent=0 // pred_check_branch
    %21 = sbr.rel (0) target = $region17
  $region16: #{multi_head_target_attention.1} parent=0 // pred_region
    _
  $region17: #{multi_head_target_attention.1} parent=0 // pred_fallthru
    _
  // Predicated region
  $region18: #{multi_head_target_attention.1} parent=0 // pred_check
    _
  $region19: #{multi_head_target_attention.1} parent=0 // pred_check_branch
    %23 = sbr.rel (0) target = $region21
  $region20: #{multi_head_target_attention.1} parent=0 // pred_region
    _
  $region21: #{multi_head_target_attention.1} parent=0 // pred_fallthru
    _
  // Predicated region
  $region22: #{multi_head_target_attention.1} parent=0 // pred_check
    _
  $region23: #{multi_head_target_attention.1} parent=0 // pred_check_branch
    %25 = sbr.rel (0) target = $region25
  $region24: #{multi_head_target_attention.1} parent=0 // pred_region
    _
  $region25: #{multi_head_target_attention.1} parent=0 // pred_fallthru
    _
  // Predicated region
  $region26: #{multi_head_target_attention.1} parent=0 // pred_check
    _
  $region27: #{multi_head_target_attention.1} parent=0 // pred_check_branch
    %27 = sbr.rel (0) target = $region29
  $region28: #{multi_head_target_attention.1} parent=0 // pred_region
    _
  $region29: #{multi_head_target_attention.1} parent=0 // pred_fallthru
    _
  // Predicated region
  $region30: #{multi_head_target_attention.1} parent=0 // pred_check
    _
  $region31: #{multi_head_target_attention.1} parent=0 // pred_check_branch
    %29 = sbr.rel (0) target = $region33
  $region32: #{multi_head_target_attention.1} parent=0 // pred_region
    _
  $region33: #{multi_head_target_attention.1} parent=0 // pred_fallthru
    _
  // Predicated region
  $region34: #{multi_head_target_attention.1} parent=0 // pred_check
    _
  $region35: #{multi_head_target_attention.1} parent=0 // pred_check_branch
    %31 = sbr.rel (0) target = $region37
  $region36: #{multi_head_target_attention.1} parent=0 // pred_region
    _
  $region37: #{multi_head_target_attention.1} parent=0 // pred_fallthru
    _
  %v32 = vld [vmem:[%s0] sm:$0xff]
  %v33 = vld [vmem:[%s0 + $0x8] sm:$0xff]
  %v34 = vld [vmem:[%s0 + $0x10] sm:$0xff]
  %v35 = vld [vmem:[%s0 + $0x18] sm:$0xff]
  %v36 = vld [vmem:[%s3] sm:$0xff]
  %v37 = vld [vmem:[%s3 + $0x8] sm:$0xff]
  %v38 = vld [vmem:[%s3 + $0x10] sm:$0xff]
  %v39 = vld [vmem:[%s3 + $0x18] sm:$0xff]
  %v40 = vld [vmem:[%s3 + $0x20] sm:$0xff]
  %v41 = vld [vmem:[%s3 + $0x28] sm:$0xff]
  %v42 = vld [vmem:[%s3 + $0x30] sm:$0xff]
  %v43 = vld [vmem:[%s3 + $0x38] sm:$0xff]
  %vm44 = vcmask 261120
  %v46 = vsel %vm44, %v32, 0
  %v49 = vsel %vm44, %v33, 0
  %v52 = vsel %vm44, %v34, 0
  %v55 = vsel %vm44, %v35, 0
  %57 = vmatprep.subr.mxu0 0.0
  %58 = vmatpush1.msra.mxu0 0.0
  %59 = vmatprep.subr.mxu0 0.0
  %60 = vmatpush1.msra.mxu0 0.0
  %61 = vmatprep.subr.mxu0 0.0
  %62 = vmatpush1.msra.mxu0 0.0
  %63 = vmatprep.subr.mxu0 0.0
  %64 = vmatpush1.msra.mxu0 0.0
  %65 = vmatprep.subr.mxu0 0.0
  %66 = vmatpush1.msra.mxu0 0.0
  %67 = vmatprep.subr.mxu0 0.0
  %68 = vmatpush1.msra.mxu0 0.0
  %69 = vmatprep.subr.mxu0 0.0
  %70 = vmatpush1.msra.mxu0 0.0
  %71 = vmatprep.subr.mxu0 0.0
  %72 = vmatpush1.msra.mxu0 0.0
  %73 = vmatprep.subr.mxu0 0.0
  %74 = vmatpush1.msra.mxu0 0.0
  %75 = vmatprep.subr.mxu0 0.0
  %76 = vmatpush1.msra.mxu0 0.0
  %77 = vmatprep.subr.mxu0 0.0
  %78 = vmatpush1.msra.mxu0 0.0
  %79 = vmatprep.subr.mxu0 0.0
  %80 = vmatpush1.msra.mxu0 0.0
  %81 = vmatprep.subr.mxu0 %v43
  %82 = vmatpush1.msra.mxu0 %v42
  %83 = vmatprep.subr.mxu0 %v41
  %84 = vmatpush1.msra.mxu0 %v40
  %85 = vmatprep.subr.mxu0 %v39
  %86 = vmatpush1.msra.mxu0 %v38
  %87 = vmatprep.subr.mxu0 %v37
  %88 = vmatpush1.msra.mxu0 %v36
  %89 = vmatprep.subr.mxu0 0.0
  %90 = vmatpush2.msra.mxu0 0.0
  %91 = vmatprep.subr.mxu0 0.0
  %92 = vmatpush2.msra.mxu0 0.0
  %93 = vmatprep.subr.mxu0 0.0
  %94 = vmatpush2.msra.mxu0 0.0
  %95 = vmatprep.subr.mxu0 0.0
  %96 = vmatpush2.msra.mxu0 0.0
  %97 = vmatprep.subr.mxu0 0.0
  %98 = vmatpush2.msra.mxu0 0.0
  %99 = vmatprep.subr.mxu0 0.0
  %100 = vmatpush2.msra.mxu0 0.0
  %101 = vmatprep.subr.mxu0 0.0
  %102 = vmatpush2.msra.mxu0 0.0
  %103 = vmatprep.subr.mxu0 0.0
  %104 = vmatpush2.msra.mxu0 0.0
  %105 = vmatprep.subr.mxu0 0.0
  %106 = vmatpush2.msra.mxu0 0.0
  %107 = vmatprep.subr.mxu0 0.0
  %108 = vmatpush2.msra.mxu0 0.0
  %109 = vmatprep.subr.mxu0 0.0
  %110 = vmatpush2.msra.mxu0 0.0
  %111 = vmatprep.subr.mxu0 0.0
  %112 = vmatpush2.msra.mxu0 0.0
  %113 = vmatprep.subr.mxu0 0.0
  %114 = vmatpush2.msra.mxu0 0.0
  %115 = vmatprep.subr.mxu0 0.0
  %116 = vmatpush2.msra.mxu0 0.0
  %117 = vmatprep.subr.mxu0 0.0
  %118 = vmatpush2.msra.mxu0 0.0
  %119 = vmatprep.subr.mxu0 0.0
  %120 = vmatpush2.msra.mxu0 0.0
  %121 = vmatprep.mubr.f32.mxu0 0.0
  %122 = vmatmul.mubr.f32.gmra.mxu0 %v46
  %v123 = vpop.f32.mrf.mxu0
  %v124 = vadd.f32 0.0, %v123
  %v125 = vpop.f32.mrf.mxu0
  %v126 = vadd.f32 0.0, %v125
  %127 = vmatprep.mubr.f32.mxu0 0.0
  %128 = vmatmul.mubr.f32.gmra.mxu0 %v49
  %v129 = vpop.f32.mrf.mxu0
  %v130 = vadd.f32 0.0, %v129
  %v131 = vpop.f32.mrf.mxu0
  %v132 = vadd.f32 0.0, %v131
  %133 = vmatprep.mubr.f32.mxu0 0.0
  %134 = vmatmul.mubr.f32.gmra.mxu0 %v52
  %v135 = vpop.f32.mrf.mxu0
  %v136 = vadd.f32 0.0, %v135
  %v137 = vpop.f32.mrf.mxu0
  %v138 = vadd.f32 0.0, %v137
  %139 = vmatprep.mubr.f32.mxu0 0.0
  %140 = vmatmul.mubr.f32.gmra.mxu0 %v55
  %v141 = vpop.f32.mrf.mxu0
  %v142 = vadd.f32 0.0, %v141
  %v143 = vpop.f32.mrf.mxu0
  %v144 = vadd.f32 0.0, %v143
  %145 = vdwg.mxu0
  %v146 = vld [vmem:[%s1] sm:$0xff]
  %v147 = vld [vmem:[%s1 + $0x8] sm:$0xff]
  %v148 = vld [vmem:[%s1 + $0x10] sm:$0xff]
  %v149 = vld [vmem:[%s1 + $0x18] sm:$0xff]
  %v150 = vld [vmem:[%s1 + $0x20] sm:$0xff]
  %v151 = vld [vmem:[%s1 + $0x28] sm:$0xff]
  %v152 = vld [vmem:[%s1 + $0x30] sm:$0xff]
  %v153 = vld [vmem:[%s1 + $0x38] sm:$0xff]
  %v154 = vld [vmem:[%s4] sm:$0xff]
  %v155 = vld [vmem:[%s4 + $0x8] sm:$0xff]
  %v156 = vld [vmem:[%s4 + $0x10] sm:$0xff]
  %v157 = vld [vmem:[%s4 + $0x18] sm:$0xff]
  %v158 = vld [vmem:[%s4 + $0x20] sm:$0xff]
  %v159 = vld [vmem:[%s4 + $0x28] sm:$0xff]
  %v160 = vld [vmem:[%s4 + $0x30] sm:$0xff]
  %v161 = vld [vmem:[%s4 + $0x38] sm:$0xff]
  %v162 = vld [vmem:[%s4 + $0x40] sm:$0xff]
  %v163 = vld [vmem:[%s4 + $0x48] sm:$0xff]
  %v164 = vld [vmem:[%s4 + $0x50] sm:$0xff]
  %v165 = vld [vmem:[%s4 + $0x58] sm:$0xff]
  %v166 = vld [vmem:[%s4 + $0x60] sm:$0xff]
  %v167 = vld [vmem:[%s4 + $0x68] sm:$0xff]
  %v168 = vld [vmem:[%s4 + $0x70] sm:$0xff]
  %v169 = vld [vmem:[%s4 + $0x78] sm:$0xff]
  %v170 = vld [vmem:[%s4 + $0x80] sm:$0xff]
  %v171 = vld [vmem:[%s4 + $0x88] sm:$0xff]
  %v172 = vld [vmem:[%s4 + $0x90] sm:$0xff]
  %v173 = vld [vmem:[%s4 + $0x98] sm:$0xff]
  %v174 = vld [vmem:[%s4 + $0xa0] sm:$0xff]
  %v175 = vld [vmem:[%s4 + $0xa8] sm:$0xff]
  %v176 = vld [vmem:[%s4 + $0xb0] sm:$0xff]
  %v177 = vld [vmem:[%s4 + $0xb8] sm:$0xff]
  %v178 = vld [vmem:[%s4 + $0xc0] sm:$0xff]
  %v179 = vld [vmem:[%s4 + $0xc8] sm:$0xff]
  %v180 = vld [vmem:[%s4 + $0xd0] sm:$0xff]
  %v181 = vld [vmem:[%s4 + $0xd8] sm:$0xff]
  %v182 = vld [vmem:[%s4 + $0xe0] sm:$0xff]
  %v183 = vld [vmem:[%s4 + $0xe8] sm:$0xff]
  %v184 = vld [vmem:[%s4 + $0xf0] sm:$0xff]
  %v185 = vld [vmem:[%s4 + $0xf8] sm:$0xff]
  %v186 = vld [vmem:[%s4 + $0x100] sm:$0xff]
  %v187 = vld [vmem:[%s4 + $0x108] sm:$0xff]
  %v188 = vld [vmem:[%s4 + $0x110] sm:$0xff]
  %v189 = vld [vmem:[%s4 + $0x118] sm:$0xff]
  %v190 = vld [vmem:[%s4 + $0x120] sm:$0xff]
  %v191 = vld [vmem:[%s4 + $0x128] sm:$0xff]
  %v192 = vld [vmem:[%s4 + $0x130] sm:$0xff]
  %v193 = vld [vmem:[%s4 + $0x138] sm:$0xff]
  %v194 = vld [vmem:[%s4 + $0x140] sm:$0xff]
  %v195 = vld [vmem:[%s4 + $0x148] sm:$0xff]
  %v196 = vld [vmem:[%s4 + $0x150] sm:$0xff]
  %v197 = vld [vmem:[%s4 + $0x158] sm:$0xff]
  %v198 = vld [vmem:[%s4 + $0x160] sm:$0xff]
  %v199 = vld [vmem:[%s4 + $0x168] sm:$0xff]
  %v200 = vld [vmem:[%s4 + $0x170] sm:$0xff]
  %v201 = vld [vmem:[%s4 + $0x178] sm:$0xff]
  %v202 = vld [vmem:[%s4 + $0x180] sm:$0xff]
  %v203 = vld [vmem:[%s4 + $0x188] sm:$0xff]
  %v204 = vld [vmem:[%s4 + $0x190] sm:$0xff]
  %v205 = vld [vmem:[%s4 + $0x198] sm:$0xff]
  %v206 = vld [vmem:[%s4 + $0x1a0] sm:$0xff]
  %v207 = vld [vmem:[%s4 + $0x1a8] sm:$0xff]
  %v208 = vld [vmem:[%s4 + $0x1b0] sm:$0xff]
  %v209 = vld [vmem:[%s4 + $0x1b8] sm:$0xff]
  %v210 = vld [vmem:[%s4 + $0x1c0] sm:$0xff]
  %v211 = vld [vmem:[%s4 + $0x1c8] sm:$0xff]
  %v212 = vld [vmem:[%s4 + $0x1d0] sm:$0xff]
  %v213 = vld [vmem:[%s4 + $0x1d8] sm:$0xff]
  %v214 = vld [vmem:[%s4 + $0x1e0] sm:$0xff]
  %v215 = vld [vmem:[%s4 + $0x1e8] sm:$0xff]
  %v216 = vld [vmem:[%s4 + $0x1f0] sm:$0xff]
  %v217 = vld [vmem:[%s4 + $0x1f8] sm:$0xff]
  %v218 = vld [vmem:[%s4 + $0x200] sm:$0xff]
  %v219 = vld [vmem:[%s4 + $0x208] sm:$0xff]
  %v220 = vld [vmem:[%s4 + $0x210] sm:$0xff]
  %v221 = vld [vmem:[%s4 + $0x218] sm:$0xff]
  %v222 = vld [vmem:[%s4 + $0x220] sm:$0xff]
  %v223 = vld [vmem:[%s4 + $0x228] sm:$0xff]
  %v224 = vld [vmem:[%s4 + $0x230] sm:$0xff]
  %v225 = vld [vmem:[%s4 + $0x238] sm:$0xff]
  %v226 = vld [vmem:[%s4 + $0x240] sm:$0xff]
  %v227 = vld [vmem:[%s4 + $0x248] sm:$0xff]
  %v228 = vld [vmem:[%s4 + $0x250] sm:$0xff]
  %v229 = vld [vmem:[%s4 + $0x258] sm:$0xff]
  %v230 = vld [vmem:[%s4 + $0x260] sm:$0xff]
  %v231 = vld [vmem:[%s4 + $0x268] sm:$0xff]
  %v232 = vld [vmem:[%s4 + $0x270] sm:$0xff]
  %v233 = vld [vmem:[%s4 + $0x278] sm:$0xff]
  %v234 = vld [vmem:[%s4 + $0x280] sm:$0xff]
  %v235 = vld [vmem:[%s4 + $0x288] sm:$0xff]
  %v236 = vld [vmem:[%s4 + $0x290] sm:$0xff]
  %v237 = vld [vmem:[%s4 + $0x298] sm:$0xff]
  %v238 = vld [vmem:[%s4 + $0x2a0] sm:$0xff]
  %v239 = vld [vmem:[%s4 + $0x2a8] sm:$0xff]
  %v240 = vld [vmem:[%s4 + $0x2b0] sm:$0xff]
  %v241 = vld [vmem:[%s4 + $0x2b8] sm:$0xff]
  %v242 = vld [vmem:[%s4 + $0x2c0] sm:$0xff]
  %v243 = vld [vmem:[%s4 + $0x2c8] sm:$0xff]
  %v244 = vld [vmem:[%s4 + $0x2d0] sm:$0xff]
  %v245 = vld [vmem:[%s4 + $0x2d8] sm:$0xff]
  %v246 = vld [vmem:[%s4 + $0x2e0] sm:$0xff]
  %v247 = vld [vmem:[%s4 + $0x2e8] sm:$0xff]
  %v248 = vld [vmem:[%s4 + $0x2f0] sm:$0xff]
  %v249 = vld [vmem:[%s4 + $0x2f8] sm:$0xff]
  %v250 = vld [vmem:[%s4 + $0x300] sm:$0xff]
  %v251 = vld [vmem:[%s4 + $0x308] sm:$0xff]
  %v252 = vld [vmem:[%s4 + $0x310] sm:$0xff]
  %v253 = vld [vmem:[%s4 + $0x318] sm:$0xff]
  %v254 = vld [vmem:[%s4 + $0x320] sm:$0xff]
  %v255 = vld [vmem:[%s4 + $0x328] sm:$0xff]
  %v256 = vld [vmem:[%s4 + $0x330] sm:$0xff]
  %v257 = vld [vmem:[%s4 + $0x338] sm:$0xff]
  %v258 = vld [vmem:[%s4 + $0x340] sm:$0xff]
  %v259 = vld [vmem:[%s4 + $0x348] sm:$0xff]
  %v260 = vld [vmem:[%s4 + $0x350] sm:$0xff]
  %v261 = vld [vmem:[%s4 + $0x358] sm:$0xff]
  %v262 = vld [vmem:[%s4 + $0x360] sm:$0xff]
  %v263 = vld [vmem:[%s4 + $0x368] sm:$0xff]
  %v264 = vld [vmem:[%s4 + $0x370] sm:$0xff]
  %v265 = vld [vmem:[%s4 + $0x378] sm:$0xff]
  %v266 = vld [vmem:[%s4 + $0x380] sm:$0xff]
  %v267 = vld [vmem:[%s4 + $0x388] sm:$0xff]
  %v268 = vld [vmem:[%s4 + $0x390] sm:$0xff]
  %v269 = vld [vmem:[%s4 + $0x398] sm:$0xff]
  %v270 = vld [vmem:[%s4 + $0x3a0] sm:$0xff]
  %v271 = vld [vmem:[%s4 + $0x3a8] sm:$0xff]
  %v272 = vld [vmem:[%s4 + $0x3b0] sm:$0xff]
  %v273 = vld [vmem:[%s4 + $0x3b8] sm:$0xff]
  %v274 = vld [vmem:[%s4 + $0x3c0] sm:$0xff]
  %v275 = vld [vmem:[%s4 + $0x3c8] sm:$0xff]
  %v276 = vld [vmem:[%s4 + $0x3d0] sm:$0xff]
  %v277 = vld [vmem:[%s4 + $0x3d8] sm:$0xff]
  %v278 = vld [vmem:[%s4 + $0x3e0] sm:$0xff]
  %v279 = vld [vmem:[%s4 + $0x3e8] sm:$0xff]
  %v280 = vld [vmem:[%s4 + $0x3f0] sm:$0xff]
  %v281 = vld [vmem:[%s4 + $0x3f8] sm:$0xff]
  %282 = vmatprep.subr.mxu0 %v215
  %283 = vmatpush1.msra.mxu0 %v214
  %284 = vmatprep.subr.mxu0 %v211
  %285 = vmatpush1.msra.mxu0 %v210
  %286 = vmatprep.subr.mxu0 %v207
  %287 = vmatpush1.msra.mxu0 %v206
  %288 = vmatprep.subr.mxu0 %v203
  %289 = vmatpush1.msra.mxu0 %v202
  %290 = vmatprep.subr.mxu0 %v199
  %291 = vmatpush1.msra.mxu0 %v198
  %292 = vmatprep.subr.mxu0 %v195
  %293 = vmatpush1.msra.mxu0 %v194
  %294 = vmatprep.subr.mxu0 %v191
  %295 = vmatpush1.msra.mxu0 %v190
  %296 = vmatprep.subr.mxu0 %v187
  %297 = vmatpush1.msra.mxu0 %v186
  %298 = vmatprep.subr.mxu0 %v183
  %299 = vmatpush1.msra.mxu0 %v182
  %300 = vmatprep.subr.mxu0 %v179
  %301 = vmatpush1.msra.mxu0 %v178
  %302 = vmatprep.subr.mxu0 %v175
  %303 = vmatpush1.msra.mxu0 %v174
  %304 = vmatprep.subr.mxu0 %v171
  %305 = vmatpush1.msra.mxu0 %v170
  %306 = vmatprep.subr.mxu0 %v167
  %307 = vmatpush1.msra.mxu0 %v166
  %308 = vmatprep.subr.mxu0 %v163
  %309 = vmatpush1.msra.mxu0 %v162
  %310 = vmatprep.subr.mxu0 %v159
  %311 = vmatpush1.msra.mxu0 %v158
  %312 = vmatprep.subr.mxu0 %v155
  %313 = vmatpush1.msra.mxu0 %v154
  %314 = vmatprep.subr.mxu0 %v279
  %315 = vmatpush2.msra.mxu0 %v278
  %316 = vmatprep.subr.mxu0 %v275
  %317 = vmatpush2.msra.mxu0 %v274
  %318 = vmatprep.subr.mxu0 %v271
  %319 = vmatpush2.msra.mxu0 %v270
  %320 = vmatprep.subr.mxu0 %v267
  %321 = vmatpush2.msra.mxu0 %v266
  %322 = vmatprep.subr.mxu0 %v263
  %323 = vmatpush2.msra.mxu0 %v262
  %324 = vmatprep.subr.mxu0 %v259
  %325 = vmatpush2.msra.mxu0 %v258
  %326 = vmatprep.subr.mxu0 %v255
  %327 = vmatpush2.msra.mxu0 %v254
  %328 = vmatprep.subr.mxu0 %v251
  %329 = vmatpush2.msra.mxu0 %v250
  %330 = vmatprep.subr.mxu0 %v247
  %331 = vmatpush2.msra.mxu0 %v246
  %332 = vmatprep.subr.mxu0 %v243
  %333 = vmatpush2.msra.mxu0 %v242
  %334 = vmatprep.subr.mxu0 %v239
  %335 = vmatpush2.msra.mxu0 %v238
  %336 = vmatprep.subr.mxu0 %v235
  %337 = vmatpush2.msra.mxu0 %v234
  %338 = vmatprep.subr.mxu0 %v231
  %339 = vmatpush2.msra.mxu0 %v230
  %340 = vmatprep.subr.mxu0 %v227
  %341 = vmatpush2.msra.mxu0 %v226
  %342 = vmatprep.subr.mxu0 %v223
  %343 = vmatpush2.msra.mxu0 %v222
  %344 = vmatprep.subr.mxu0 %v219
  %345 = vmatpush2.msra.mxu0 %v218
  %346 = vmatprep.mubr.f32.mxu0 %v147
  %347 = vmatmul.mubr.f32.gmra.mxu0 %v146
  %v348 = vpop.f32.mrf.mxu0
  %v349 = vadd.f32 0.0, %v348
  %v350 = vpop.f32.mrf.mxu0
  %v351 = vadd.f32 0.0, %v350
  %352 = vmatprep.mubr.f32.mxu0 %v149
  %353 = vmatmul.mubr.f32.gmra.mxu0 %v148
  %v354 = vpop.f32.mrf.mxu0
  %v355 = vadd.f32 0.0, %v354
  %v356 = vpop.f32.mrf.mxu0
  %v357 = vadd.f32 0.0, %v356
  %358 = vmatprep.mubr.f32.mxu0 %v151
  %359 = vmatmul.mubr.f32.gmra.mxu0 %v150
  %v360 = vpop.f32.mrf.mxu0
  %v361 = vadd.f32 0.0, %v360
  %v362 = vpop.f32.mrf.mxu0
  %v363 = vadd.f32 0.0, %v362
  %364 = vmatprep.mubr.f32.mxu0 %v153
  %365 = vmatmul.mubr.f32.gmra.mxu0 %v152
  %v366 = vpop.f32.mrf.mxu0
  %v367 = vadd.f32 0.0, %v366
  %v368 = vpop.f32.mrf.mxu0
  %v369 = vadd.f32 0.0, %v368
  %370 = vdwg.mxu0
  %371 = vmatprep.subr.mxu0 %v217
  %372 = vmatpush1.msra.mxu0 %v216
  %373 = vmatprep.subr.mxu0 %v213
  %374 = vmatpush1.msra.mxu0 %v212
  %375 = vmatprep.subr.mxu0 %v209
  %376 = vmatpush1.msra.mxu0 %v208
  %377 = vmatprep.subr.mxu0 %v205
  %378 = vmatpush1.msra.mxu0 %v204
  %379 = vmatprep.subr.mxu0 %v201
  %380 = vmatpush1.msra.mxu0 %v200
  %381 = vmatprep.subr.mxu0 %v197
  %382 = vmatpush1.msra.mxu0 %v196
  %383 = vmatprep.subr.mxu0 %v193
  %384 = vmatpush1.msra.mxu0 %v192
  %385 = vmatprep.subr.mxu0 %v189
  %386 = vmatpush1.msra.mxu0 %v188
  %387 = vmatprep.subr.mxu0 %v185
  %388 = vmatpush1.msra.mxu0 %v184
  %389 = vmatprep.subr.mxu0 %v181
  %390 = vmatpush1.msra.mxu0 %v180
  %391 = vmatprep.subr.mxu0 %v177
  %392 = vmatpush1.msra.mxu0 %v176
  %393 = vmatprep.subr.mxu0 %v173
  %394 = vmatpush1.msra.mxu0 %v172
  %395 = vmatprep.subr.mxu0 %v169
  %396 = vmatpush1.msra.mxu0 %v168
  %397 = vmatprep.subr.mxu0 %v165
  %398 = vmatpush1.msra.mxu0 %v164
  %399 = vmatprep.subr.mxu0 %v161
  %400 = vmatpush1.msra.mxu0 %v160
  %401 = vmatprep.subr.mxu0 %v157
  %402 = vmatpush1.msra.mxu0 %v156
  %403 = vmatprep.subr.mxu0 %v281
  %404 = vmatpush2.msra.mxu0 %v280
  %405 = vmatprep.subr.mxu0 %v277
  %406 = vmatpush2.msra.mxu0 %v276
  %407 = vmatprep.subr.mxu0 %v273
  %408 = vmatpush2.msra.mxu0 %v272
  %409 = vmatprep.subr.mxu0 %v269
  %410 = vmatpush2.msra.mxu0 %v268
  %411 = vmatprep.subr.mxu0 %v265
  %412 = vmatpush2.msra.mxu0 %v264
  %413 = vmatprep.subr.mxu0 %v261
  %414 = vmatpush2.msra.mxu0 %v260
  %415 = vmatprep.subr.mxu0 %v257
  %416 = vmatpush2.msra.mxu0 %v256
  %417 = vmatprep.subr.mxu0 %v253
  %418 = vmatpush2.msra.mxu0 %v252
  %419 = vmatprep.subr.mxu0 %v249
  %420 = vmatpush2.msra.mxu0 %v248
  %421 = vmatprep.subr.mxu0 %v245
  %422 = vmatpush2.msra.mxu0 %v244
  %423 = vmatprep.subr.mxu0 %v241
  %424 = vmatpush2.msra.mxu0 %v240
  %425 = vmatprep.subr.mxu0 %v237
  %426 = vmatpush2.msra.mxu0 %v236
  %427 = vmatprep.subr.mxu0 %v233
  %428 = vmatpush2.msra.mxu0 %v232
  %429 = vmatprep.subr.mxu0 %v229
  %430 = vmatpush2.msra.mxu0 %v228
  %431 = vmatprep.subr.mxu0 %v225
  %432 = vmatpush2.msra.mxu0 %v224
  %433 = vmatprep.subr.mxu0 %v221
  %434 = vmatpush2.msra.mxu0 %v220
  %435 = vmatprep.mubr.f32.mxu0 %v147
  %436 = vmatmul.mubr.f32.gmra.mxu0 %v146
  %v437 = vpop.f32.mrf.mxu0
  %v438 = vadd.f32 0.0, %v437
  %v439 = vpop.f32.mrf.mxu0
  %v440 = vadd.f32 0.0, %v439
  %441 = vmatprep.mubr.f32.mxu0 %v149
  %442 = vmatmul.mubr.f32.gmra.mxu0 %v148
  %v443 = vpop.f32.mrf.mxu0
  %v444 = vadd.f32 0.0, %v443
  %v445 = vpop.f32.mrf.mxu0
  %v446 = vadd.f32 0.0, %v445
  %447 = vmatprep.mubr.f32.mxu0 %v151
  %448 = vmatmul.mubr.f32.gmra.mxu0 %v150
  %v449 = vpop.f32.mrf.mxu0
  %v450 = vadd.f32 0.0, %v449
  %v451 = vpop.f32.mrf.mxu0
  %v452 = vadd.f32 0.0, %v451
  %453 = vmatprep.mubr.f32.mxu0 %v153
  %454 = vmatmul.mubr.f32.gmra.mxu0 %v152
  %v455 = vpop.f32.mrf.mxu0
  %v456 = vadd.f32 0.0, %v455
  %v457 = vpop.f32.mrf.mxu0
  %v458 = vadd.f32 0.0, %v457
  %459 = vdwg.mxu0
  %v460 = vmul.f32 %v349, %v124
  %v461 = vmul.f32 %v351, %v126
  %v462 = vmul.f32 %v355, %v130
  %v463 = vmul.f32 %v357, %v132
  %v464 = vmul.f32 %v361, %v136
  %v465 = vmul.f32 %v363, %v138
  %v466 = vmul.f32 %v367, %v142
  %v467 = vmul.f32 %v369, %v144
  %v468 = vld [vmem:[%s5] sm:$0xff]
  %v469 = vld [vmem:[%s5 + $0x8] sm:$0xff]
  %v470 = vld [vmem:[%s5 + $0x10] sm:$0xff]
  %v471 = vld [vmem:[%s5 + $0x18] sm:$0xff]
  %v472 = vld [vmem:[%s5 + $0x20] sm:$0xff]
  %v473 = vld [vmem:[%s5 + $0x28] sm:$0xff]
  %v474 = vld [vmem:[%s5 + $0x30] sm:$0xff]
  %v475 = vld [vmem:[%s5 + $0x38] sm:$0xff]
  %v476 = vld [vmem:[%s5 + $0x40] sm:$0xff]
  %v477 = vld [vmem:[%s5 + $0x48] sm:$0xff]
  %v478 = vld [vmem:[%s5 + $0x50] sm:$0xff]
  %v479 = vld [vmem:[%s5 + $0x58] sm:$0xff]
  %v480 = vld [vmem:[%s5 + $0x60] sm:$0xff]
  %v481 = vld [vmem:[%s5 + $0x68] sm:$0xff]
  %v482 = vld [vmem:[%s5 + $0x70] sm:$0xff]
  %v483 = vld [vmem:[%s5 + $0x78] sm:$0xff]
  %v484 = vld [vmem:[%s5 + $0x80] sm:$0xff]
  %v485 = vld [vmem:[%s5 + $0x88] sm:$0xff]
  %v486 = vld [vmem:[%s5 + $0x90] sm:$0xff]
  %v487 = vld [vmem:[%s5 + $0x98] sm:$0xff]
  %v488 = vld [vmem:[%s5 + $0xa0] sm:$0xff]
  %v489 = vld [vmem:[%s5 + $0xa8] sm:$0xff]
  %v490 = vld [vmem:[%s5 + $0xb0] sm:$0xff]
  %v491 = vld [vmem:[%s5 + $0xb8] sm:$0xff]
  %v492 = vld [vmem:[%s5 + $0xc0] sm:$0xff]
  %v493 = vld [vmem:[%s5 + $0xc8] sm:$0xff]
  %v494 = vld [vmem:[%s5 + $0xd0] sm:$0xff]
  %v495 = vld [vmem:[%s5 + $0xd8] sm:$0xff]
  %v496 = vld [vmem:[%s5 + $0xe0] sm:$0xff]
  %v497 = vld [vmem:[%s5 + $0xe8] sm:$0xff]
  %v498 = vld [vmem:[%s5 + $0xf0] sm:$0xff]
  %v499 = vld [vmem:[%s5 + $0xf8] sm:$0xff]
  %v500 = vld [vmem:[%s2] sm:$0xff]
  %v501 = vld [vmem:[%s2 + $0x8] sm:$0xff]
  %v502 = vld [vmem:[%s2 + $0x10] sm:$0xff]
  %v503 = vld [vmem:[%s2 + $0x18] sm:$0xff]
  %504 = vmatprep.subr.mxu0 0.0
  %505 = vmatpush1.msra.mxu0 %v483
  %506 = vmatprep.subr.mxu0 0.0
  %507 = vmatpush1.msra.mxu0 %v482
  %508 = vmatprep.subr.mxu0 0.0
  %509 = vmatpush1.msra.mxu0 %v481
  %510 = vmatprep.subr.mxu0 0.0
  %511 = vmatpush1.msra.mxu0 %v480
  %512 = vmatprep.subr.mxu0 0.0
  %513 = vmatpush1.msra.mxu0 %v479
  %514 = vmatprep.subr.mxu0 0.0
  %515 = vmatpush1.msra.mxu0 %v478
  %516 = vmatprep.subr.mxu0 0.0
  %517 = vmatpush1.msra.mxu0 %v477
  %518 = vmatprep.subr.mxu0 0.0
  %519 = vmatpush1.msra.mxu0 %v476
  %520 = vmatprep.subr.mxu0 0.0
  %521 = vmatpush1.msra.mxu0 %v475
  %522 = vmatprep.subr.mxu0 0.0
  %523 = vmatpush1.msra.mxu0 %v474
  %524 = vmatprep.subr.mxu0 0.0
  %525 = vmatpush1.msra.mxu0 %v473
  %526 = vmatprep.subr.mxu0 0.0
  %527 = vmatpush1.msra.mxu0 %v472
  %528 = vmatprep.subr.mxu0 0.0
  %529 = vmatpush1.msra.mxu0 %v471
  %530 = vmatprep.subr.mxu0 0.0
  %531 = vmatpush1.msra.mxu0 %v470
  %532 = vmatprep.subr.mxu0 0.0
  %533 = vmatpush1.msra.mxu0 %v469
  %534 = vmatprep.subr.mxu0 0.0
  %535 = vmatpush1.msra.mxu0 %v468
  %536 = vmatprep.subr.mxu0 0.0
  %537 = vmatpush2.msra.mxu0 %v499
  %538 = vmatprep.subr.mxu0 0.0
  %539 = vmatpush2.msra.mxu0 %v498
  %540 = vmatprep.subr.mxu0 0.0
  %541 = vmatpush2.msra.mxu0 %v497
  %542 = vmatprep.subr.mxu0 0.0
  %543 = vmatpush2.msra.mxu0 %v496
  %544 = vmatprep.subr.mxu0 0.0
  %545 = vmatpush2.msra.mxu0 %v495
  %546 = vmatprep.subr.mxu0 0.0
  %547 = vmatpush2.msra.mxu0 %v494
  %548 = vmatprep.subr.mxu0 0.0
  %549 = vmatpush2.msra.mxu0 %v493
  %550 = vmatprep.subr.mxu0 0.0
  %551 = vmatpush2.msra.mxu0 %v492
  %552 = vmatprep.subr.mxu0 0.0
  %553 = vmatpush2.msra.mxu0 %v491
  %554 = vmatprep.subr.mxu0 0.0
  %555 = vmatpush2.msra.mxu0 %v490
  %556 = vmatprep.subr.mxu0 0.0
  %557 = vmatpush2.msra.mxu0 %v489
  %558 = vmatprep.subr.mxu0 0.0
  %559 = vmatpush2.msra.mxu0 %v488
  %560 = vmatprep.subr.mxu0 0.0
  %561 = vmatpush2.msra.mxu0 %v487
  %562 = vmatprep.subr.mxu0 0.0
  %563 = vmatpush2.msra.mxu0 %v486
  %564 = vmatprep.subr.mxu0 0.0
  %565 = vmatpush2.msra.mxu0 %v485
  %566 = vmatprep.subr.mxu0 0.0
  %567 = vmatpush2.msra.mxu0 %v484
  %568 = vmatprep.mubr.f32.mxu0 %v461
  %569 = vmatmul.mubr.f32.gmra.mxu0 %v460
  %v570 = vpop.f32.mrf.mxu0
  %v571 = vadd.f32 %v500, %v570
  %v572 = vpop.f32.mrf.mxu0
  %573 = vmatprep.mubr.f32.mxu0 %v463
  %574 = vmatmul.mubr.f32.gmra.mxu0 %v462
  %v575 = vpop.f32.mrf.mxu0
  %v576 = vadd.f32 %v501, %v575
  %v577 = vpop.f32.mrf.mxu0
  %578 = vmatprep.mubr.f32.mxu0 %v465
  %579 = vmatmul.mubr.f32.gmra.mxu0 %v464
  %v580 = vpop.f32.mrf.mxu0
  %v581 = vadd.f32 %v502, %v580
  %v582 = vpop.f32.mrf.mxu0
  %583 = vmatprep.mubr.f32.mxu0 %v467
  %584 = vmatmul.mubr.f32.gmra.mxu0 %v466
  %v585 = vpop.f32.mrf.mxu0
  %v586 = vadd.f32 %v503, %v585
  %v587 = vpop.f32.mrf.mxu0
  %588 = vdwg.mxu0
  %v589 = vlaneseq
  %v590 = vand.u32 %v589, 127
  %vm591 = vcmp.ge.s32.totalorder %v590, 0
  %vm592 = vcmp.lt.s32.totalorder %v590, 8
  %vm593 = vmand %vm591, %vm592
  %v594 = vsel %vm593, 1, 0
  %vm595 = vcmp.eq.s32.totalorder %v594, 1
  %v596 = vsel %vm595, %v571, -1e+30
  %v597 = vsel %vm595, %v576, -1e+30
  %v598 = vsel %vm595, %v581, -1e+30
  %v599 = vsel %vm595, %v586, -1e+30
  %vm600 = vcmask 130048
  %v601 = vsel %vm600, %v596, -inf
  %602 = vmax.xlane.f32.xlu0 %v601
  %v603 = vpop.xlane.xlu0 %602
  %v604 = vsel %vm600, %v597, -inf
  %605 = vmax.xlane.f32.xlu0 %v604
  %v606 = vpop.xlane.xlu0 %605
  %v607 = vsel %vm600, %v598, -inf
  %608 = vmax.xlane.f32.xlu0 %v607
  %v609 = vpop.xlane.xlu0 %608
  %v610 = vsel %vm600, %v599, -inf
  %611 = vmax.xlane.f32.xlu0 %v610
  %v612 = vpop.xlane.xlu0 %611
  %vm613 = vcmp.ge.s32.totalorder %v590, 8
  %vm614 = vcmp.lt.s32.totalorder %v590, 16
  %vm615 = vmand %vm613, %vm614
  %v616 = vsel %vm615, 1, 0
  %vm617 = vcmp.eq.s32.totalorder %v616, 1
  %v618 = vsel %vm617, %v571, -1e+30
  %v619 = vsel %vm617, %v576, -1e+30
  %v620 = vsel %vm617, %v581, -1e+30
  %v621 = vsel %vm617, %v586, -1e+30
  %v622 = vsel %vm600, %v618, -inf
  %623 = vmax.xlane.f32.xlu0 %v622
  %v624 = vpop.xlane.xlu0 %623
  %v625 = vsel %vm600, %v619, -inf
  %626 = vmax.xlane.f32.xlu0 %v625
  %v627 = vpop.xlane.xlu0 %626
  %v628 = vsel %vm600, %v620, -inf
  %629 = vmax.xlane.f32.xlu0 %v628
  %v630 = vpop.xlane.xlu0 %629
  %v631 = vsel %vm600, %v621, -inf
  %632 = vmax.xlane.f32.xlu0 %v631
  %v633 = vpop.xlane.xlu0 %632
  %v634 = vsel %vm617, %v624, %v603
  %v635 = vsel %vm617, %v627, %v606
  %v636 = vsel %vm617, %v630, %v609
  %v637 = vsel %vm617, %v633, %v612
  %v638 = vsub.f32 %v571, %v634
  %v639 = vsub.f32 %v576, %v635
  %v640 = vsub.f32 %v581, %v636
  %v641 = vsub.f32 %v586, %v637
  %v642 = vmul.f32 %v638, 1.442695
  %v643 = vpow.pop %v642
  %v644 = vmul.f32 %v639, 1.442695
  %v645 = vpow.pop %v644
  %v646 = vmul.f32 %v640, 1.442695
  %v647 = vpow.pop %v646
  %v648 = vmul.f32 %v641, 1.442695
  %v649 = vpow.pop %v648
  %v650 = vld [vmem:[%s6] sm:$0xff]
  %v651 = vld [vmem:[%s6 + $0x8] sm:$0xff]
  %v653 = vsel %vm600, %v643, 0
  %v656 = vsel %vm600, %v645, 0
  %v659 = vsel %vm600, %v647, 0
  %v662 = vsel %vm600, %v649, 0
  %664 = vmatprep.subr.mxu0 0.0
  %665 = vmatpush1.msra.mxu0 0.0
  %666 = vmatprep.subr.mxu0 0.0
  %667 = vmatpush1.msra.mxu0 0.0
  %668 = vmatprep.subr.mxu0 0.0
  %669 = vmatpush1.msra.mxu0 0.0
  %670 = vmatprep.subr.mxu0 0.0
  %671 = vmatpush1.msra.mxu0 0.0
  %672 = vmatprep.subr.mxu0 0.0
  %673 = vmatpush1.msra.mxu0 0.0
  %674 = vmatprep.subr.mxu0 0.0
  %675 = vmatpush1.msra.mxu0 0.0
  %676 = vmatprep.subr.mxu0 0.0
  %677 = vmatpush1.msra.mxu0 0.0
  %678 = vmatprep.subr.mxu0 0.0
  %679 = vmatpush1.msra.mxu0 0.0
  %680 = vmatprep.subr.mxu0 0.0
  %681 = vmatpush1.msra.mxu0 0.0
  %682 = vmatprep.subr.mxu0 0.0
  %683 = vmatpush1.msra.mxu0 0.0
  %684 = vmatprep.subr.mxu0 0.0
  %685 = vmatpush1.msra.mxu0 0.0
  %686 = vmatprep.subr.mxu0 0.0
  %687 = vmatpush1.msra.mxu0 0.0
  %688 = vmatprep.subr.mxu0 0.0
  %689 = vmatpush1.msra.mxu0 0.0
  %690 = vmatprep.subr.mxu0 0.0
  %691 = vmatpush1.msra.mxu0 0.0
  %692 = vmatprep.subr.mxu0 0.0
  %693 = vmatpush1.msra.mxu0 %v651
  %694 = vmatprep.subr.mxu0 0.0
  %695 = vmatpush1.msra.mxu0 %v650
  %696 = vmatprep.subr.mxu0 0.0
  %697 = vmatpush2.msra.mxu0 0.0
  %698 = vmatprep.subr.mxu0 0.0
  %699 = vmatpush2.msra.mxu0 0.0
  %700 = vmatprep.subr.mxu0 0.0
  %701 = vmatpush2.msra.mxu0 0.0
  %702 = vmatprep.subr.mxu0 0.0
  %703 = vmatpush2.msra.mxu0 0.0
  %704 = vmatprep.subr.mxu0 0.0
  %705 = vmatpush2.msra.mxu0 0.0
  %706 = vmatprep.subr.mxu0 0.0
  %707 = vmatpush2.msra.mxu0 0.0
  %708 = vmatprep.subr.mxu0 0.0
  %709 = vmatpush2.msra.mxu0 0.0
  %710 = vmatprep.subr.mxu0 0.0
  %711 = vmatpush2.msra.mxu0 0.0
  %712 = vmatprep.subr.mxu0 0.0
  %713 = vmatpush2.msra.mxu0 0.0
  %714 = vmatprep.subr.mxu0 0.0
  %715 = vmatpush2.msra.mxu0 0.0
  %716 = vmatprep.subr.mxu0 0.0
  %717 = vmatpush2.msra.mxu0 0.0
  %718 = vmatprep.subr.mxu0 0.0
  %719 = vmatpush2.msra.mxu0 0.0
  %720 = vmatprep.subr.mxu0 0.0
  %721 = vmatpush2.msra.mxu0 0.0
  %722 = vmatprep.subr.mxu0 0.0
  %723 = vmatpush2.msra.mxu0 0.0
  %724 = vmatprep.subr.mxu0 0.0
  %725 = vmatpush2.msra.mxu0 0.0
  %726 = vmatprep.subr.mxu0 0.0
  %727 = vmatpush2.msra.mxu0 0.0
  %728 = vmatprep.mubr.f32.mxu0 0.0
  %729 = vmatmul.mubr.f32.gmra.mxu0 %v653
  %v730 = vpop.f32.mrf.mxu0
  %v731 = vadd.f32 0.0, %v730
  %v732 = vpop.f32.mrf.mxu0
  %733 = vmatprep.mubr.f32.mxu0 0.0
  %734 = vmatmul.mubr.f32.gmra.mxu0 %v656
  %v735 = vpop.f32.mrf.mxu0
  %v736 = vadd.f32 0.0, %v735
  %v737 = vpop.f32.mrf.mxu0
  %738 = vmatprep.mubr.f32.mxu0 0.0
  %739 = vmatmul.mubr.f32.gmra.mxu0 %v659
  %v740 = vpop.f32.mrf.mxu0
  %v741 = vadd.f32 0.0, %v740
  %v742 = vpop.f32.mrf.mxu0
  %743 = vmatprep.mubr.f32.mxu0 0.0
  %744 = vmatmul.mubr.f32.gmra.mxu0 %v662
  %v745 = vpop.f32.mrf.mxu0
  %v746 = vadd.f32 0.0, %v745
  %v747 = vpop.f32.mrf.mxu0
  %748 = vdwg.mxu0
  %v749 = vrcp.pop %v731
  %v750 = vrcp.pop %v736
  %v751 = vrcp.pop %v741
  %v752 = vrcp.pop %v746
  %v753 = vmul.f32 %v643, %v749
  %v754 = vmul.f32 %v645, %v750
  %v755 = vmul.f32 %v647, %v751
  %v756 = vmul.f32 %v649, %v752
  %v757 = vld [vmem:[%s7] sm:$0xff]
  %v758 = vld [vmem:[%s7 + $0x8] sm:$0xff]
  %v759 = vld [vmem:[%s7 + $0x10] sm:$0xff]
  %v760 = vld [vmem:[%s7 + $0x18] sm:$0xff]
  %v762 = vsel %vm600, %v753, 0
  %v765 = vsel %vm600, %v754, 0
  %v768 = vsel %vm600, %v755, 0
  %v771 = vsel %vm600, %v756, 0
  %773 = vmatprep.subr.mxu0 0.0
  %774 = vmatpush1.msra.mxu0 0.0
  %775 = vmatprep.subr.mxu0 0.0
  %776 = vmatpush1.msra.mxu0 0.0
  %777 = vmatprep.subr.mxu0 0.0
  %778 = vmatpush1.msra.mxu0 0.0
  %779 = vmatprep.subr.mxu0 0.0
  %780 = vmatpush1.msra.mxu0 0.0
  %781 = vmatprep.subr.mxu0 0.0
  %782 = vmatpush1.msra.mxu0 0.0
  %783 = vmatprep.subr.mxu0 0.0
  %784 = vmatpush1.msra.mxu0 0.0
  %785 = vmatprep.subr.mxu0 0.0
  %786 = vmatpush1.msra.mxu0 0.0
  %787 = vmatprep.subr.mxu0 0.0
  %788 = vmatpush1.msra.mxu0 0.0
  %789 = vmatprep.subr.mxu0 0.0
  %790 = vmatpush1.msra.mxu0 0.0
  %791 = vmatprep.subr.mxu0 0.0
  %792 = vmatpush1.msra.mxu0 0.0
  %793 = vmatprep.subr.mxu0 0.0
  %794 = vmatpush1.msra.mxu0 0.0
  %795 = vmatprep.subr.mxu0 0.0
  %796 = vmatpush1.msra.mxu0 0.0
  %797 = vmatprep.subr.mxu0 0.0
  %798 = vmatpush1.msra.mxu0 0.0
  %799 = vmatprep.subr.mxu0 0.0
  %800 = vmatpush1.msra.mxu0 0.0
  %801 = vmatprep.subr.mxu0 %v760
  %802 = vmatpush1.msra.mxu0 %v759
  %803 = vmatprep.subr.mxu0 %v758
  %804 = vmatpush1.msra.mxu0 %v757
  %805 = vmatprep.subr.mxu0 0.0
  %806 = vmatpush2.msra.mxu0 0.0
  %807 = vmatprep.subr.mxu0 0.0
  %808 = vmatpush2.msra.mxu0 0.0
  %809 = vmatprep.subr.mxu0 0.0
  %810 = vmatpush2.msra.mxu0 0.0
  %811 = vmatprep.subr.mxu0 0.0
  %812 = vmatpush2.msra.mxu0 0.0
  %813 = vmatprep.subr.mxu0 0.0
  %814 = vmatpush2.msra.mxu0 0.0
  %815 = vmatprep.subr.mxu0 0.0
  %816 = vmatpush2.msra.mxu0 0.0
  %817 = vmatprep.subr.mxu0 0.0
  %818 = vmatpush2.msra.mxu0 0.0
  %819 = vmatprep.subr.mxu0 0.0
  %820 = vmatpush2.msra.mxu0 0.0
  %821 = vmatprep.subr.mxu0 0.0
  %822 = vmatpush2.msra.mxu0 0.0
  %823 = vmatprep.subr.mxu0 0.0
  %824 = vmatpush2.msra.mxu0 0.0
  %825 = vmatprep.subr.mxu0 0.0
  %826 = vmatpush2.msra.mxu0 0.0
  %827 = vmatprep.subr.mxu0 0.0
  %828 = vmatpush2.msra.mxu0 0.0
  %829 = vmatprep.subr.mxu0 0.0
  %830 = vmatpush2.msra.mxu0 0.0
  %831 = vmatprep.subr.mxu0 0.0
  %832 = vmatpush2.msra.mxu0 0.0
  %833 = vmatprep.subr.mxu0 0.0
  %834 = vmatpush2.msra.mxu0 0.0
  %835 = vmatprep.subr.mxu0 0.0
  %836 = vmatpush2.msra.mxu0 0.0
  %837 = vmatprep.mubr.f32.mxu0 0.0
  %838 = vmatmul.mubr.f32.gmra.mxu0 %v762
  %v839 = vpop.f32.mrf.mxu0
  %v840 = vadd.f32 0.0, %v839
  %v841 = vpop.f32.mrf.mxu0
  %v842 = vadd.f32 0.0, %v841
  %843 = vmatprep.mubr.f32.mxu0 0.0
  %844 = vmatmul.mubr.f32.gmra.mxu0 %v765
  %v845 = vpop.f32.mrf.mxu0
  %v846 = vadd.f32 0.0, %v845
  %v847 = vpop.f32.mrf.mxu0
  %v848 = vadd.f32 0.0, %v847
  %849 = vmatprep.mubr.f32.mxu0 0.0
  %850 = vmatmul.mubr.f32.gmra.mxu0 %v768
  %v851 = vpop.f32.mrf.mxu0
  %v852 = vadd.f32 0.0, %v851
  %v853 = vpop.f32.mrf.mxu0
  %v854 = vadd.f32 0.0, %v853
  %855 = vmatprep.mubr.f32.mxu0 0.0
  %856 = vmatmul.mubr.f32.gmra.mxu0 %v771
  %v857 = vpop.f32.mrf.mxu0
  %v858 = vadd.f32 0.0, %v857
  %v859 = vpop.f32.mrf.mxu0
  %v860 = vadd.f32 0.0, %v859
  %861 = vdwg.mxu0
  %v862 = vmul.f32 %v840, %v438
  %v863 = vmul.f32 %v842, %v440
  %v864 = vmul.f32 %v846, %v444
  %v865 = vmul.f32 %v848, %v446
  %v866 = vmul.f32 %v852, %v450
  %v867 = vmul.f32 %v854, %v452
  %v868 = vmul.f32 %v858, %v456
  %v869 = vmul.f32 %v860, %v458
  %v870 = vld [vmem:[%s8] sm:$0xff]
  %v871 = vld [vmem:[%s8 + $0x8] sm:$0xff]
  %v872 = vld [vmem:[%s8 + $0x10] sm:$0xff]
  %v873 = vld [vmem:[%s8 + $0x18] sm:$0xff]
  %v874 = vld [vmem:[%s8 + $0x20] sm:$0xff]
  %v875 = vld [vmem:[%s8 + $0x28] sm:$0xff]
  %v876 = vld [vmem:[%s8 + $0x30] sm:$0xff]
  %v877 = vld [vmem:[%s8 + $0x38] sm:$0xff]
  %v878 = vld [vmem:[%s8 + $0x40] sm:$0xff]
  %v879 = vld [vmem:[%s8 + $0x48] sm:$0xff]
  %v880 = vld [vmem:[%s8 + $0x50] sm:$0xff]
  %v881 = vld [vmem:[%s8 + $0x58] sm:$0xff]
  %v882 = vld [vmem:[%s8 + $0x60] sm:$0xff]
  %v883 = vld [vmem:[%s8 + $0x68] sm:$0xff]
  %v884 = vld [vmem:[%s8 + $0x70] sm:$0xff]
  %v885 = vld [vmem:[%s8 + $0x78] sm:$0xff]
  %v886 = vld [vmem:[%s8 + $0x80] sm:$0xff]
  %v887 = vld [vmem:[%s8 + $0x88] sm:$0xff]
  %v888 = vld [vmem:[%s8 + $0x90] sm:$0xff]
  %v889 = vld [vmem:[%s8 + $0x98] sm:$0xff]
  %v890 = vld [vmem:[%s8 + $0xa0] sm:$0xff]
  %v891 = vld [vmem:[%s8 + $0xa8] sm:$0xff]
  %v892 = vld [vmem:[%s8 + $0xb0] sm:$0xff]
  %v893 = vld [vmem:[%s8 + $0xb8] sm:$0xff]
  %v894 = vld [vmem:[%s8 + $0xc0] sm:$0xff]
  %v895 = vld [vmem:[%s8 + $0xc8] sm:$0xff]
  %v896 = vld [vmem:[%s8 + $0xd0] sm:$0xff]
  %v897 = vld [vmem:[%s8 + $0xd8] sm:$0xff]
  %v898 = vld [vmem:[%s8 + $0xe0] sm:$0xff]
  %v899 = vld [vmem:[%s8 + $0xe8] sm:$0xff]
  %v900 = vld [vmem:[%s8 + $0xf0] sm:$0xff]
  %v901 = vld [vmem:[%s8 + $0xf8] sm:$0xff]
  %v902 = vld [vmem:[%s8 + $0x100] sm:$0xff]
  %v903 = vld [vmem:[%s8 + $0x108] sm:$0xff]
  %v904 = vld [vmem:[%s8 + $0x110] sm:$0xff]
  %v905 = vld [vmem:[%s8 + $0x118] sm:$0xff]
  %v906 = vld [vmem:[%s8 + $0x120] sm:$0xff]
  %v907 = vld [vmem:[%s8 + $0x128] sm:$0xff]
  %v908 = vld [vmem:[%s8 + $0x130] sm:$0xff]
  %v909 = vld [vmem:[%s8 + $0x138] sm:$0xff]
  %v910 = vld [vmem:[%s8 + $0x140] sm:$0xff]
  %v911 = vld [vmem:[%s8 + $0x148] sm:$0xff]
  %v912 = vld [vmem:[%s8 + $0x150] sm:$0xff]
  %v913 = vld [vmem:[%s8 + $0x158] sm:$0xff]
  %v914 = vld [vmem:[%s8 + $0x160] sm:$0xff]
  %v915 = vld [vmem:[%s8 + $0x168] sm:$0xff]
  %v916 = vld [vmem:[%s8 + $0x170] sm:$0xff]
  %v917 = vld [vmem:[%s8 + $0x178] sm:$0xff]
  %v918 = vld [vmem:[%s8 + $0x180] sm:$0xff]
  %v919 = vld [vmem:[%s8 + $0x188] sm:$0xff]
  %v920 = vld [vmem:[%s8 + $0x190] sm:$0xff]
  %v921 = vld [vmem:[%s8 + $0x198] sm:$0xff]
  %v922 = vld [vmem:[%s8 + $0x1a0] sm:$0xff]
  %v923 = vld [vmem:[%s8 + $0x1a8] sm:$0xff]
  %v924 = vld [vmem:[%s8 + $0x1b0] sm:$0xff]
  %v925 = vld [vmem:[%s8 + $0x1b8] sm:$0xff]
  %v926 = vld [vmem:[%s8 + $0x1c0] sm:$0xff]
  %v927 = vld [vmem:[%s8 + $0x1c8] sm:$0xff]
  %v928 = vld [vmem:[%s8 + $0x1d0] sm:$0xff]
  %v929 = vld [vmem:[%s8 + $0x1d8] sm:$0xff]
  %v930 = vld [vmem:[%s8 + $0x1e0] sm:$0xff]
  %v931 = vld [vmem:[%s8 + $0x1e8] sm:$0xff]
  %v932 = vld [vmem:[%s8 + $0x1f0] sm:$0xff]
  %v933 = vld [vmem:[%s8 + $0x1f8] sm:$0xff]
  %v934 = vld [vmem:[%s8 + $0x200] sm:$0xff]
  %v935 = vld [vmem:[%s8 + $0x208] sm:$0xff]
  %v936 = vld [vmem:[%s8 + $0x210] sm:$0xff]
  %v937 = vld [vmem:[%s8 + $0x218] sm:$0xff]
  %v938 = vld [vmem:[%s8 + $0x220] sm:$0xff]
  %v939 = vld [vmem:[%s8 + $0x228] sm:$0xff]
  %v940 = vld [vmem:[%s8 + $0x230] sm:$0xff]
  %v941 = vld [vmem:[%s8 + $0x238] sm:$0xff]
  %v942 = vld [vmem:[%s8 + $0x240] sm:$0xff]
  %v943 = vld [vmem:[%s8 + $0x248] sm:$0xff]
  %v944 = vld [vmem:[%s8 + $0x250] sm:$0xff]
  %v945 = vld [vmem:[%s8 + $0x258] sm:$0xff]
  %v946 = vld [vmem:[%s8 + $0x260] sm:$0xff]
  %v947 = vld [vmem:[%s8 + $0x268] sm:$0xff]
  %v948 = vld [vmem:[%s8 + $0x270] sm:$0xff]
  %v949 = vld [vmem:[%s8 + $0x278] sm:$0xff]
  %v950 = vld [vmem:[%s8 + $0x280] sm:$0xff]
  %v951 = vld [vmem:[%s8 + $0x288] sm:$0xff]
  %v952 = vld [vmem:[%s8 + $0x290] sm:$0xff]
  %v953 = vld [vmem:[%s8 + $0x298] sm:$0xff]
  %v954 = vld [vmem:[%s8 + $0x2a0] sm:$0xff]
  %v955 = vld [vmem:[%s8 + $0x2a8] sm:$0xff]
  %v956 = vld [vmem:[%s8 + $0x2b0] sm:$0xff]
  %v957 = vld [vmem:[%s8 + $0x2b8] sm:$0xff]
  %v958 = vld [vmem:[%s8 + $0x2c0] sm:$0xff]
  %v959 = vld [vmem:[%s8 + $0x2c8] sm:$0xff]
  %v960 = vld [vmem:[%s8 + $0x2d0] sm:$0xff]
  %v961 = vld [vmem:[%s8 + $0x2d8] sm:$0xff]
  %v962 = vld [vmem:[%s8 + $0x2e0] sm:$0xff]
  %v963 = vld [vmem:[%s8 + $0x2e8] sm:$0xff]
  %v964 = vld [vmem:[%s8 + $0x2f0] sm:$0xff]
  %v965 = vld [vmem:[%s8 + $0x2f8] sm:$0xff]
  %v966 = vld [vmem:[%s8 + $0x300] sm:$0xff]
  %v967 = vld [vmem:[%s8 + $0x308] sm:$0xff]
  %v968 = vld [vmem:[%s8 + $0x310] sm:$0xff]
  %v969 = vld [vmem:[%s8 + $0x318] sm:$0xff]
  %v970 = vld [vmem:[%s8 + $0x320] sm:$0xff]
  %v971 = vld [vmem:[%s8 + $0x328] sm:$0xff]
  %v972 = vld [vmem:[%s8 + $0x330] sm:$0xff]
  %v973 = vld [vmem:[%s8 + $0x338] sm:$0xff]
  %v974 = vld [vmem:[%s8 + $0x340] sm:$0xff]
  %v975 = vld [vmem:[%s8 + $0x348] sm:$0xff]
  %v976 = vld [vmem:[%s8 + $0x350] sm:$0xff]
  %v977 = vld [vmem:[%s8 + $0x358] sm:$0xff]
  %v978 = vld [vmem:[%s8 + $0x360] sm:$0xff]
  %v979 = vld [vmem:[%s8 + $0x368] sm:$0xff]
  %v980 = vld [vmem:[%s8 + $0x370] sm:$0xff]
  %v981 = vld [vmem:[%s8 + $0x378] sm:$0xff]
  %v982 = vld [vmem:[%s8 + $0x380] sm:$0xff]
  %v983 = vld [vmem:[%s8 + $0x388] sm:$0xff]
  %v984 = vld [vmem:[%s8 + $0x390] sm:$0xff]
  %v985 = vld [vmem:[%s8 + $0x398] sm:$0xff]
  %v986 = vld [vmem:[%s8 + $0x3a0] sm:$0xff]
  %v987 = vld [vmem:[%s8 + $0x3a8] sm:$0xff]
  %v988 = vld [vmem:[%s8 + $0x3b0] sm:$0xff]
  %v989 = vld [vmem:[%s8 + $0x3b8] sm:$0xff]
  %v990 = vld [vmem:[%s8 + $0x3c0] sm:$0xff]
  %v991 = vld [vmem:[%s8 + $0x3c8] sm:$0xff]
  %v992 = vld [vmem:[%s8 + $0x3d0] sm:$0xff]
  %v993 = vld [vmem:[%s8 + $0x3d8] sm:$0xff]
  %v994 = vld [vmem:[%s8 + $0x3e0] sm:$0xff]
  %v995 = vld [vmem:[%s8 + $0x3e8] sm:$0xff]
  %v996 = vld [vmem:[%s8 + $0x3f0] sm:$0xff]
  %v997 = vld [vmem:[%s8 + $0x3f8] sm:$0xff]
  %998 = vmatprep.subr.mxu0 0.0
  %999 = vmatpush1.msra.mxu0 %v885
  %1000 = vmatprep.subr.mxu0 0.0
  %1001 = vmatpush1.msra.mxu0 %v884
  %1002 = vmatprep.subr.mxu0 0.0
  %1003 = vmatpush1.msra.mxu0 %v883
  %1004 = vmatprep.subr.mxu0 0.0
  %1005 = vmatpush1.msra.mxu0 %v882
  %1006 = vmatprep.subr.mxu0 0.0
  %1007 = vmatpush1.msra.mxu0 %v881
  %1008 = vmatprep.subr.mxu0 0.0
  %1009 = vmatpush1.msra.mxu0 %v880
  %1010 = vmatprep.subr.mxu0 0.0
  %1011 = vmatpush1.msra.mxu0 %v879
  %1012 = vmatprep.subr.mxu0 0.0
  %1013 = vmatpush1.msra.mxu0 %v878
  %1014 = vmatprep.subr.mxu0 0.0
  %1015 = vmatpush1.msra.mxu0 %v877
  %1016 = vmatprep.subr.mxu0 0.0
  %1017 = vmatpush1.msra.mxu0 %v876
  %1018 = vmatprep.subr.mxu0 0.0
  %1019 = vmatpush1.msra.mxu0 %v875
  %1020 = vmatprep.subr.mxu0 0.0
  %1021 = vmatpush1.msra.mxu0 %v874
  %1022 = vmatprep.subr.mxu0 0.0
  %1023 = vmatpush1.msra.mxu0 %v873
  %1024 = vmatprep.subr.mxu0 0.0
  %1025 = vmatpush1.msra.mxu0 %v872
  %1026 = vmatprep.subr.mxu0 0.0
  %1027 = vmatpush1.msra.mxu0 %v871
  %1028 = vmatprep.subr.mxu0 0.0
  %1029 = vmatpush1.msra.mxu0 %v870
  %1030 = vmatprep.subr.mxu0 0.0
  %1031 = vmatpush2.msra.mxu0 %v901
  %1032 = vmatprep.subr.mxu0 0.0
  %1033 = vmatpush2.msra.mxu0 %v900
  %1034 = vmatprep.subr.mxu0 0.0
  %1035 = vmatpush2.msra.mxu0 %v899
  %1036 = vmatprep.subr.mxu0 0.0
  %1037 = vmatpush2.msra.mxu0 %v898
  %1038 = vmatprep.subr.mxu0 0.0
  %1039 = vmatpush2.msra.mxu0 %v897
  %1040 = vmatprep.subr.mxu0 0.0
  %1041 = vmatpush2.msra.mxu0 %v896
  %1042 = vmatprep.subr.mxu0 0.0
  %1043 = vmatpush2.msra.mxu0 %v895
  %1044 = vmatprep.subr.mxu0 0.0
  %1045 = vmatpush2.msra.mxu0 %v894
  %1046 = vmatprep.subr.mxu0 0.0
  %1047 = vmatpush2.msra.mxu0 %v893
  %1048 = vmatprep.subr.mxu0 0.0
  %1049 = vmatpush2.msra.mxu0 %v892
  %1050 = vmatprep.subr.mxu0 0.0
  %1051 = vmatpush2.msra.mxu0 %v891
  %1052 = vmatprep.subr.mxu0 0.0
  %1053 = vmatpush2.msra.mxu0 %v890
  %1054 = vmatprep.subr.mxu0 0.0
  %1055 = vmatpush2.msra.mxu0 %v889
  %1056 = vmatprep.subr.mxu0 0.0
  %1057 = vmatpush2.msra.mxu0 %v888
  %1058 = vmatprep.subr.mxu0 0.0
  %1059 = vmatpush2.msra.mxu0 %v887
  %1060 = vmatprep.subr.mxu0 0.0
  %1061 = vmatpush2.msra.mxu0 %v886
  %1062 = vmatprep.mubr.f32.mxu0 %v863
  %1063 = vmatmul.mubr.f32.gmra.mxu0 %v862
  %v1064 = vpop.f32.mrf.mxu0
  %v1065 = vadd.f32 0.0, %v1064
  %v1066 = vpop.f32.mrf.mxu0
  %1067 = vdwg.mxu0
  %1068 = vmatprep.subr.mxu0 0.0
  %1069 = vmatpush1.msra.mxu0 %v917
  %1070 = vmatprep.subr.mxu0 0.0
  %1071 = vmatpush1.msra.mxu0 %v916
  %1072 = vmatprep.subr.mxu0 0.0
  %1073 = vmatpush1.msra.mxu0 %v915
  %1074 = vmatprep.subr.mxu0 0.0
  %1075 = vmatpush1.msra.mxu0 %v914
  %1076 = vmatprep.subr.mxu0 0.0
  %1077 = vmatpush1.msra.mxu0 %v913
  %1078 = vmatprep.subr.mxu0 0.0
  %1079 = vmatpush1.msra.mxu0 %v912
  %1080 = vmatprep.subr.mxu0 0.0
  %1081 = vmatpush1.msra.mxu0 %v911
  %1082 = vmatprep.subr.mxu0 0.0
  %1083 = vmatpush1.msra.mxu0 %v910
  %1084 = vmatprep.subr.mxu0 0.0
  %1085 = vmatpush1.msra.mxu0 %v909
  %1086 = vmatprep.subr.mxu0 0.0
  %1087 = vmatpush1.msra.mxu0 %v908
  %1088 = vmatprep.subr.mxu0 0.0
  %1089 = vmatpush1.msra.mxu0 %v907
  %1090 = vmatprep.subr.mxu0 0.0
  %1091 = vmatpush1.msra.mxu0 %v906
  %1092 = vmatprep.subr.mxu0 0.0
  %1093 = vmatpush1.msra.mxu0 %v905
  %1094 = vmatprep.subr.mxu0 0.0
  %1095 = vmatpush1.msra.mxu0 %v904
  %1096 = vmatprep.subr.mxu0 0.0
  %1097 = vmatpush1.msra.mxu0 %v903
  %1098 = vmatprep.subr.mxu0 0.0
  %1099 = vmatpush1.msra.mxu0 %v902
  %1100 = vmatprep.subr.mxu0 0.0
  %1101 = vmatpush2.msra.mxu0 %v933
  %1102 = vmatprep.subr.mxu0 0.0
  %1103 = vmatpush2.msra.mxu0 %v932
  %1104 = vmatprep.subr.mxu0 0.0
  %1105 = vmatpush2.msra.mxu0 %v931
  %1106 = vmatprep.subr.mxu0 0.0
  %1107 = vmatpush2.msra.mxu0 %v930
  %1108 = vmatprep.subr.mxu0 0.0
  %1109 = vmatpush2.msra.mxu0 %v929
  %1110 = vmatprep.subr.mxu0 0.0
  %1111 = vmatpush2.msra.mxu0 %v928
  %1112 = vmatprep.subr.mxu0 0.0
  %1113 = vmatpush2.msra.mxu0 %v927
  %1114 = vmatprep.subr.mxu0 0.0
  %1115 = vmatpush2.msra.mxu0 %v926
  %1116 = vmatprep.subr.mxu0 0.0
  %1117 = vmatpush2.msra.mxu0 %v925
  %1118 = vmatprep.subr.mxu0 0.0
  %1119 = vmatpush2.msra.mxu0 %v924
  %1120 = vmatprep.subr.mxu0 0.0
  %1121 = vmatpush2.msra.mxu0 %v923
  %1122 = vmatprep.subr.mxu0 0.0
  %1123 = vmatpush2.msra.mxu0 %v922
  %1124 = vmatprep.subr.mxu0 0.0
  %1125 = vmatpush2.msra.mxu0 %v921
  %1126 = vmatprep.subr.mxu0 0.0
  %1127 = vmatpush2.msra.mxu0 %v920
  %1128 = vmatprep.subr.mxu0 0.0
  %1129 = vmatpush2.msra.mxu0 %v919
  %1130 = vmatprep.subr.mxu0 0.0
  %1131 = vmatpush2.msra.mxu0 %v918
  %1132 = vmatprep.mubr.f32.mxu0 %v865
  %1133 = vmatmul.mubr.f32.gmra.mxu0 %v864
  %v1134 = vpop.f32.mrf.mxu0
  %v1135 = vadd.f32 %v1065, %v1134
  %v1136 = vpop.f32.mrf.mxu0
  %1137 = vdwg.mxu0
  %1138 = vmatprep.subr.mxu0 0.0
  %1139 = vmatpush1.msra.mxu0 %v949
  %1140 = vmatprep.subr.mxu0 0.0
  %1141 = vmatpush1.msra.mxu0 %v948
  %1142 = vmatprep.subr.mxu0 0.0
  %1143 = vmatpush1.msra.mxu0 %v947
  %1144 = vmatprep.subr.mxu0 0.0
  %1145 = vmatpush1.msra.mxu0 %v946
  %1146 = vmatprep.subr.mxu0 0.0
  %1147 = vmatpush1.msra.mxu0 %v945
  %1148 = vmatprep.subr.mxu0 0.0
  %1149 = vmatpush1.msra.mxu0 %v944
  %1150 = vmatprep.subr.mxu0 0.0
  %1151 = vmatpush1.msra.mxu0 %v943
  %1152 = vmatprep.subr.mxu0 0.0
  %1153 = vmatpush1.msra.mxu0 %v942
  %1154 = vmatprep.subr.mxu0 0.0
  %1155 = vmatpush1.msra.mxu0 %v941
  %1156 = vmatprep.subr.mxu0 0.0
  %1157 = vmatpush1.msra.mxu0 %v940
  %1158 = vmatprep.subr.mxu0 0.0
  %1159 = vmatpush1.msra.mxu0 %v939
  %1160 = vmatprep.subr.mxu0 0.0
  %1161 = vmatpush1.msra.mxu0 %v938
  %1162 = vmatprep.subr.mxu0 0.0
  %1163 = vmatpush1.msra.mxu0 %v937
  %1164 = vmatprep.subr.mxu0 0.0
  %1165 = vmatpush1.msra.mxu0 %v936
  %1166 = vmatprep.subr.mxu0 0.0
  %1167 = vmatpush1.msra.mxu0 %v935
  %1168 = vmatprep.subr.mxu0 0.0
  %1169 = vmatpush1.msra.mxu0 %v934
  %1170 = vmatprep.subr.mxu0 0.0
  %1171 = vmatpush2.msra.mxu0 %v965
  %1172 = vmatprep.subr.mxu0 0.0
  %1173 = vmatpush2.msra.mxu0 %v964
  %1174 = vmatprep.subr.mxu0 0.0
  %1175 = vmatpush2.msra.mxu0 %v963
  %1176 = vmatprep.subr.mxu0 0.0
  %1177 = vmatpush2.msra.mxu0 %v962
  %1178 = vmatprep.subr.mxu0 0.0
  %1179 = vmatpush2.msra.mxu0 %v961
  %1180 = vmatprep.subr.mxu0 0.0
  %1181 = vmatpush2.msra.mxu0 %v960
  %1182 = vmatprep.subr.mxu0 0.0
  %1183 = vmatpush2.msra.mxu0 %v959
  %1184 = vmatprep.subr.mxu0 0.0
  %1185 = vmatpush2.msra.mxu0 %v958
  %1186 = vmatprep.subr.mxu0 0.0
  %1187 = vmatpush2.msra.mxu0 %v957
  %1188 = vmatprep.subr.mxu0 0.0
  %1189 = vmatpush2.msra.mxu0 %v956
  %1190 = vmatprep.subr.mxu0 0.0
  %1191 = vmatpush2.msra.mxu0 %v955
  %1192 = vmatprep.subr.mxu0 0.0
  %1193 = vmatpush2.msra.mxu0 %v954
  %1194 = vmatprep.subr.mxu0 0.0
  %1195 = vmatpush2.msra.mxu0 %v953
  %1196 = vmatprep.subr.mxu0 0.0
  %1197 = vmatpush2.msra.mxu0 %v952
  %1198 = vmatprep.subr.mxu0 0.0
  %1199 = vmatpush2.msra.mxu0 %v951
  %1200 = vmatprep.subr.mxu0 0.0
  %1201 = vmatpush2.msra.mxu0 %v950
  %1202 = vmatprep.mubr.f32.mxu0 %v867
  %1203 = vmatmul.mubr.f32.gmra.mxu0 %v866
  %v1204 = vpop.f32.mrf.mxu0
  %v1205 = vadd.f32 %v1135, %v1204
  %v1206 = vpop.f32.mrf.mxu0
  %1207 = vdwg.mxu0
  %1208 = vmatprep.subr.mxu0 0.0
  %1209 = vmatpush1.msra.mxu0 %v981
  %1210 = vmatprep.subr.mxu0 0.0
  %1211 = vmatpush1.msra.mxu0 %v980
  %1212 = vmatprep.subr.mxu0 0.0
  %1213 = vmatpush1.msra.mxu0 %v979
  %1214 = vmatprep.subr.mxu0 0.0
  %1215 = vmatpush1.msra.mxu0 %v978
  %1216 = vmatprep.subr.mxu0 0.0
  %1217 = vmatpush1.msra.mxu0 %v977
  %1218 = vmatprep.subr.mxu0 0.0
  %1219 = vmatpush1.msra.mxu0 %v976
  %1220 = vmatprep.subr.mxu0 0.0
  %1221 = vmatpush1.msra.mxu0 %v975
  %1222 = vmatprep.subr.mxu0 0.0
  %1223 = vmatpush1.msra.mxu0 %v974
  %1224 = vmatprep.subr.mxu0 0.0
  %1225 = vmatpush1.msra.mxu0 %v973
  %1226 = vmatprep.subr.mxu0 0.0
  %1227 = vmatpush1.msra.mxu0 %v972
  %1228 = vmatprep.subr.mxu0 0.0
  %1229 = vmatpush1.msra.mxu0 %v971
  %1230 = vmatprep.subr.mxu0 0.0
  %1231 = vmatpush1.msra.mxu0 %v970
  %1232 = vmatprep.subr.mxu0 0.0
  %1233 = vmatpush1.msra.mxu0 %v969
  %1234 = vmatprep.subr.mxu0 0.0
  %1235 = vmatpush1.msra.mxu0 %v968
  %1236 = vmatprep.subr.mxu0 0.0
  %1237 = vmatpush1.msra.mxu0 %v967
  %1238 = vmatprep.subr.mxu0 0.0
  %1239 = vmatpush1.msra.mxu0 %v966
  %1240 = vmatprep.subr.mxu0 0.0
  %1241 = vmatpush2.msra.mxu0 %v997
  %1242 = vmatprep.subr.mxu0 0.0
  %1243 = vmatpush2.msra.mxu0 %v996
  %1244 = vmatprep.subr.mxu0 0.0
  %1245 = vmatpush2.msra.mxu0 %v995
  %1246 = vmatprep.subr.mxu0 0.0
  %1247 = vmatpush2.msra.mxu0 %v994
  %1248 = vmatprep.subr.mxu0 0.0
  %1249 = vmatpush2.msra.mxu0 %v993
  %1250 = vmatprep.subr.mxu0 0.0
  %1251 = vmatpush2.msra.mxu0 %v992
  %1252 = vmatprep.subr.mxu0 0.0
  %1253 = vmatpush2.msra.mxu0 %v991
  %1254 = vmatprep.subr.mxu0 0.0
  %1255 = vmatpush2.msra.mxu0 %v990
  %1256 = vmatprep.subr.mxu0 0.0
  %1257 = vmatpush2.msra.mxu0 %v989
  %1258 = vmatprep.subr.mxu0 0.0
  %1259 = vmatpush2.msra.mxu0 %v988
  %1260 = vmatprep.subr.mxu0 0.0
  %1261 = vmatpush2.msra.mxu0 %v987
  %1262 = vmatprep.subr.mxu0 0.0
  %1263 = vmatpush2.msra.mxu0 %v986
  %1264 = vmatprep.subr.mxu0 0.0
  %1265 = vmatpush2.msra.mxu0 %v985
  %1266 = vmatprep.subr.mxu0 0.0
  %1267 = vmatpush2.msra.mxu0 %v984
  %1268 = vmatprep.subr.mxu0 0.0
  %1269 = vmatpush2.msra.mxu0 %v983
  %1270 = vmatprep.subr.mxu0 0.0
  %1271 = vmatpush2.msra.mxu0 %v982
  %1272 = vmatprep.mubr.f32.mxu0 %v869
  %1273 = vmatmul.mubr.f32.gmra.mxu0 %v868
  %v1274 = vpop.f32.mrf.mxu0
  %v1275 = vadd.f32 %v1205, %v1274
  %v1276 = vpop.f32.mrf.mxu0
  %1277 = vdwg.mxu0
  %1278 = vst [vmem:[%s9] sm:$0xff] %v1275
  // Predicated region
  $region38: #{multi_head_target_attention.1} parent=0 // pred_check
    _
  $region39: #{multi_head_target_attention.1} parent=0 // pred_check_branch
    %1280 = sbr.rel (0) target = $region41
  $region40: #{multi_head_target_attention.1} parent=0 // pred_region
    _
  $region41: #{multi_head_target_attention.1} parent=0 // pred_fallthru
    _
  // Predicated region
  $region42: #{multi_head_target_attention.1} parent=0 // pred_check
    _
  $region43: #{multi_head_target_attention.1} parent=0 // pred_check_branch
    %1282 = sbr.rel (0) target = $region45
  $region44: #{multi_head_target_attention.1} parent=0 // pred_region
    _
  $region45: #{multi_head_target_attention.1} parent=0 // pred_fallthru
    _

</llo_original>
